<compile_context>
chip_gen: v7x
topology: tpu7x:2x2x1
jax: 0.10.0
libtpu: 0.0.40
codegen_flags: <defaults>
</compile_context>

<pallas_src>
import jax
import jax.numpy as jnp
from jax.experimental import pallas as pl
from jax.experimental.pallas import tpu as pltpu

H_DIM = 400
IN_DIM = 2
OUT_DIM = 2

H_PAD = 512     # 400 padded up to a multiple of 128
OUT_PAD = 128   # 2 padded up to one full lane group (lane-dense stores)
TM_MAX = 1024   # batch tile; ~6 MiB of f32 activations per tile -> fits
                # comfortably inside default scoped VMEM on v5e/v6e/v7x


def _round_up(x, m):
    return ((x + m - 1) // m) * m


def generator_kernel(z_ref,
                     w1_ref, b1_ref,
                     w2_ref, b2_ref,
                     w3_ref, b3_ref,
                     w4_ref, b4_ref,
                     o_ref):
    z = z_ref[...]  # (TM, 2)

    # Layer 1: K=2 contraction as a VPU outer-product (broadcast mul-adds);
    # cheaper than a systolic matmul at this contraction depth and frees the
    # MXU for the 400x400 layers.
    h = (z[:, 0:1] * w1_ref[0:1, :]
         + z[:, 1:2] * w1_ref[1:2, :]
         + b1_ref[...])
    h = jnp.maximum(h, 0.0)

    # Layers 2 & 3: full (TM,512)@(512,512) MXU matmuls.
    h = jnp.dot(h, w2_ref[...], preferred_element_type=jnp.float32) + b2_ref[...]
    h = jnp.maximum(h, 0.0)

    h = jnp.dot(h, w3_ref[...], preferred_element_type=jnp.float32) + b3_ref[...]
    h = jnp.maximum(h, 0.0)

    # Layer 4: (TM,512)@(512,128) -> lane-dense (TM,128) store; the wrapper
    # slices the first 2 columns.
    o_ref[...] = (jnp.dot(h, w4_ref[...], preferred_element_type=jnp.float32)
                  + b4_ref[...])


def init_params(key):
    """Deterministic init mimicking PyTorch nn.Linear defaults:
    weight, bias ~ U(-1/sqrt(fan_in), 1/sqrt(fan_in)).
    Weights stored PyTorch-style as (out_features, in_features)."""
    dims = [(H_DIM, IN_DIM), (H_DIM, H_DIM), (H_DIM, H_DIM), (OUT_DIM, H_DIM)]
    params = []
    for (out_f, in_f) in dims:
        key, kw, kb = jax.random.split(key, 3)
        bound = 1.0 / jnp.sqrt(jnp.float32(in_f))
        w = jax.random.uniform(kw, (out_f, in_f), jnp.float32, -bound, bound)
        b = jax.random.uniform(kb, (out_f,), jnp.float32, -bound, bound)
        params.append((w, b))
    return params


def prepare_params(params):
    """One-time parameter prep (hoisted out of the forward path):
    transpose to (in, out), zero-pad to MXU-friendly (multiple-of-128) shapes."""
    def pad_to(a, shape):
        pads = [(0, s - d) for d, s in zip(a.shape, shape)]
        return jnp.pad(a, pads)

    (w1, b1), (w2, b2), (w3, b3), (w4, b4) = params
    w1p = pad_to(jnp.asarray(w1.T, jnp.float32), (IN_DIM, H_PAD))
    b1p = pad_to(jnp.asarray(b1, jnp.float32)[None, :], (1, H_PAD))
    w2p = pad_to(jnp.asarray(w2.T, jnp.float32), (H_PAD, H_PAD))
    b2p = pad_to(jnp.asarray(b2, jnp.float32)[None, :], (1, H_PAD))
    w3p = pad_to(jnp.asarray(w3.T, jnp.float32), (H_PAD, H_PAD))
    b3p = pad_to(jnp.asarray(b3, jnp.float32)[None, :], (1, H_PAD))
    w4p = pad_to(jnp.asarray(w4.T, jnp.float32), (H_PAD, OUT_PAD))
    b4p = pad_to(jnp.asarray(b4, jnp.float32)[None, :], (1, OUT_PAD))
    return (w1p, b1p, w2p, b2p, w3p, b3p, w4p, b4p)


def generator_forward(z, prepared):
    batch = z.shape[0]
    tm = min(TM_MAX, _round_up(batch, 8))
    padded_batch = _round_up(batch, tm)

    z32 = jnp.asarray(z, jnp.float32)
    if padded_batch != batch:
        z32 = jnp.pad(z32, ((0, padded_batch - batch), (0, 0)))

    grid = (padded_batch // tm,)

    # Weights/biases: full-shape blocks, constant index_map -> resident across
    # the whole grid (fetched once), while z / out tiles are pipelined.
    weight_specs = [
        pl.BlockSpec((IN_DIM, H_PAD), lambda i: (0, 0)),
        pl.BlockSpec((1, H_PAD), lambda i: (0, 0)),
        pl.BlockSpec((H_PAD, H_PAD), lambda i: (0, 0)),
        pl.BlockSpec((1, H_PAD), lambda i: (0, 0)),
        pl.BlockSpec((H_PAD, H_PAD), lambda i: (0, 0)),
        pl.BlockSpec((1, H_PAD), lambda i: (0, 0)),
        pl.BlockSpec((H_PAD, OUT_PAD), lambda i: (0, 0)),
        pl.BlockSpec((1, OUT_PAD), lambda i: (0, 0)),
    ]

    flops = 2 * batch * (IN_DIM * H_DIM + 2 * H_DIM * H_DIM + H_DIM * OUT_DIM)
    bytes_accessed = 4 * (z32.size
                          + sum(int(p.size) for p in prepared)
                          + padded_batch * OUT_PAD)

    out_padded = pl.pallas_call(
        generator_kernel,
        out_shape=jax.ShapeDtypeStruct((padded_batch, OUT_PAD), jnp.float32),
        grid=grid,
        in_specs=[pl.BlockSpec((tm, IN_DIM), lambda i: (i, 0))] + weight_specs,
        out_specs=pl.BlockSpec((tm, OUT_PAD), lambda i: (i, 0)),
        compiler_params=pltpu.CompilerParams(
            dimension_semantics=("parallel",)),
        cost_estimate=pl.CostEstimate(
            flops=flops, transcendentals=0, bytes_accessed=bytes_accessed),
    )(z32, *prepared)

    return out_padded[:batch, :OUT_DIM]


def generator_reference(z, params):
    h = jnp.asarray(z, jnp.float32)
    for i, (w, b) in enumerate(params):
        h = h @ w.T + b
        if i < len(params) - 1:
            h = jnp.maximum(h, 0.0)
    return h


if __name__ == "__main__":
    key = jax.random.PRNGKey(0)
    key_params, key_z = jax.random.split(key)

    params = init_params(key_params)
    prepared = prepare_params(params)

    batch = 16
    z = jax.random.normal(key_z, (batch, IN_DIM), jnp.float32)

    out = generator_forward(z, prepared)
    out = jax.block_until_ready(out)

    ref = generator_reference(z, params)
    assert out.shape == (batch, OUT_DIM)
    assert jnp.allclose(out, ref, atol=1e-4, rtol=1e-4), "mismatch vs reference"

    print("KERNEL_OK")
</pallas_src>

<mosaic_0001>
module attributes {stable_mosaic.version = 11 : i64} {
  func.func @generator_kernel(%arg0: i32, %arg1: memref<16x2xf32, #tpu.memory_space<vmem>>, %arg2: memref<2x512xf32, #tpu.memory_space<vmem>>, %arg3: memref<1x512xf32, #tpu.memory_space<vmem>>, %arg4: memref<512x512xf32, #tpu.memory_space<vmem>>, %arg5: memref<1x512xf32, #tpu.memory_space<vmem>>, %arg6: memref<512x512xf32, #tpu.memory_space<vmem>>, %arg7: memref<1x512xf32, #tpu.memory_space<vmem>>, %arg8: memref<512x128xf32, #tpu.memory_space<vmem>>, %arg9: memref<1x128xf32, #tpu.memory_space<vmem>>, %arg10: memref<16x128xf32, #tpu.memory_space<vmem>>) attributes {dimension_semantics = [#tpu.dimension_semantics<parallel>], iteration_bounds = array<i64: 1>, scalar_prefetch = 0 : i64, scratch_operands = 0 : i64, tpu.core_type = #tpu.core_type<tc>, window_params = [{transform_indices = @transform_0, window_bounds = array<i64: 16, 2>}, {pipeline_mode = #tpu.pipeline_mode<synchronous>, transform_indices = @transform_1, window_bounds = array<i64: 2, 512>}, {pipeline_mode = #tpu.pipeline_mode<synchronous>, transform_indices = @transform_2, window_bounds = array<i64: 1, 512>}, {pipeline_mode = #tpu.pipeline_mode<synchronous>, transform_indices = @transform_3, window_bounds = array<i64: 512, 512>}, {pipeline_mode = #tpu.pipeline_mode<synchronous>, transform_indices = @transform_4, window_bounds = array<i64: 1, 512>}, {pipeline_mode = #tpu.pipeline_mode<synchronous>, transform_indices = @transform_5, window_bounds = array<i64: 512, 512>}, {pipeline_mode = #tpu.pipeline_mode<synchronous>, transform_indices = @transform_6, window_bounds = array<i64: 1, 512>}, {pipeline_mode = #tpu.pipeline_mode<synchronous>, transform_indices = @transform_7, window_bounds = array<i64: 512, 128>}, {pipeline_mode = #tpu.pipeline_mode<synchronous>, transform_indices = @transform_8, window_bounds = array<i64: 1, 128>}, {transform_indices = @transform_9, window_bounds = array<i64: 16, 128>}]} {
    %c0 = arith.constant 0 : index
    %c0_0 = arith.constant 0 : index
    %0 = vector.load %arg1[%c0, %c0_0] : memref<16x2xf32, #tpu.memory_space<vmem>>, vector<16x2xf32>
    %1 = vector.extract_strided_slice %0 {offsets = [0, 0], sizes = [16, 1], strides = [1, 1]} : vector<16x2xf32> to vector<16x1xf32>
    %c0_1 = arith.constant 0 : index
    %c0_2 = arith.constant 0 : index
    %2 = vector.load %arg2[%c0_1, %c0_2] : memref<2x512xf32, #tpu.memory_space<vmem>>, vector<1x512xf32>
    %3 = vector.broadcast %1 : vector<16x1xf32> to vector<16x512xf32>
    %4 = vector.broadcast %2 : vector<1x512xf32> to vector<16x512xf32>
    %5 = arith.mulf %3, %4 : vector<16x512xf32>
    %6 = vector.extract_strided_slice %0 {offsets = [0, 1], sizes = [16, 1], strides = [1, 1]} : vector<16x2xf32> to vector<16x1xf32>
    %c1 = arith.constant 1 : index
    %c0_3 = arith.constant 0 : index
    %7 = vector.load %arg2[%c1, %c0_3] : memref<2x512xf32, #tpu.memory_space<vmem>>, vector<1x512xf32>
    %8 = vector.broadcast %6 : vector<16x1xf32> to vector<16x512xf32>
    %9 = vector.broadcast %7 : vector<1x512xf32> to vector<16x512xf32>
    %10 = arith.mulf %8, %9 : vector<16x512xf32>
    %11 = arith.addf %5, %10 : vector<16x512xf32>
    %c0_4 = arith.constant 0 : index
    %c0_5 = arith.constant 0 : index
    %12 = vector.load %arg3[%c0_4, %c0_5] : memref<1x512xf32, #tpu.memory_space<vmem>>, vector<1x512xf32>
    %13 = vector.broadcast %12 : vector<1x512xf32> to vector<16x512xf32>
    %14 = arith.addf %11, %13 : vector<16x512xf32>
    %cst = arith.constant 0.000000e+00 : f32
    %15 = vector.broadcast %cst : f32 to vector<16x512xf32>
    %16 = arith.maximumf %14, %15 : vector<16x512xf32>
    %c0_6 = arith.constant 0 : index
    %c0_7 = arith.constant 0 : index
    %17 = vector.load %arg4[%c0_6, %c0_7] : memref<512x512xf32, #tpu.memory_space<vmem>>, vector<512x512xf32>
    %cst_8 = arith.constant dense<0.000000e+00> : vector<16x512xf32>
    %18 = tpu.matmul %16, %17, %cst_8 {dimension_numbers = #tpu.dot_dimension_numbers<[1], [0], [0], [1], [0, 0, 1, 1], [], []>} : vector<16x512xf32>, vector<512x512xf32>, vector<16x512xf32> -> vector<16x512xf32>
    %c0_9 = arith.constant 0 : index
    %c0_10 = arith.constant 0 : index
    %19 = vector.load %arg5[%c0_9, %c0_10] : memref<1x512xf32, #tpu.memory_space<vmem>>, vector<1x512xf32>
    %20 = vector.broadcast %19 : vector<1x512xf32> to vector<16x512xf32>
    %21 = arith.addf %18, %20 : vector<16x512xf32>
    %cst_11 = arith.constant 0.000000e+00 : f32
    %22 = vector.broadcast %cst_11 : f32 to vector<16x512xf32>
    %23 = arith.maximumf %21, %22 : vector<16x512xf32>
    %c0_12 = arith.constant 0 : index
    %c0_13 = arith.constant 0 : index
    %24 = vector.load %arg6[%c0_12, %c0_13] : memref<512x512xf32, #tpu.memory_space<vmem>>, vector<512x512xf32>
    %cst_14 = arith.constant dense<0.000000e+00> : vector<16x512xf32>
    %25 = tpu.matmul %23, %24, %cst_14 {dimension_numbers = #tpu.dot_dimension_numbers<[1], [0], [0], [1], [0, 0, 1, 1], [], []>} : vector<16x512xf32>, vector<512x512xf32>, vector<16x512xf32> -> vector<16x512xf32>
    %c0_15 = arith.constant 0 : index
    %c0_16 = arith.constant 0 : index
    %26 = vector.load %arg7[%c0_15, %c0_16] : memref<1x512xf32, #tpu.memory_space<vmem>>, vector<1x512xf32>
    %27 = vector.broadcast %26 : vector<1x512xf32> to vector<16x512xf32>
    %28 = arith.addf %25, %27 : vector<16x512xf32>
    %cst_17 = arith.constant 0.000000e+00 : f32
    %29 = vector.broadcast %cst_17 : f32 to vector<16x512xf32>
    %30 = arith.maximumf %28, %29 : vector<16x512xf32>
    %c0_18 = arith.constant 0 : index
    %c0_19 = arith.constant 0 : index
    %31 = vector.load %arg8[%c0_18, %c0_19] : memref<512x128xf32, #tpu.memory_space<vmem>>, vector<512x128xf32>
    %cst_20 = arith.constant dense<0.000000e+00> : vector<16x128xf32>
    %32 = tpu.matmul %30, %31, %cst_20 {dimension_numbers = #tpu.dot_dimension_numbers<[1], [0], [0], [1], [0, 0, 1, 1], [], []>} : vector<16x512xf32>, vector<512x128xf32>, vector<16x128xf32> -> vector<16x128xf32>
    %c0_21 = arith.constant 0 : index
    %c0_22 = arith.constant 0 : index
    %33 = vector.load %arg9[%c0_21, %c0_22] : memref<1x128xf32, #tpu.memory_space<vmem>>, vector<1x128xf32>
    %34 = vector.broadcast %33 : vector<1x128xf32> to vector<16x128xf32>
    %35 = arith.addf %32, %34 : vector<16x128xf32>
    %c0_23 = arith.constant 0 : index
    %c0_24 = arith.constant 0 : index
    %36 = vector.load %arg10[%c0_23, %c0_24] : memref<16x128xf32, #tpu.memory_space<vmem>>, vector<16x128xf32>
    tpu.vector_store %arg10[%c0_23, %c0_24], %35 {strides = array<i32>} : memref<16x128xf32, #tpu.memory_space<vmem>>, vector<16x128xf32>,
    return
  }
  func.func @transform_0(%arg0: i32) -> (i32, i32) {
    %c0_i32 = arith.constant 0 : i32
    %c0_i32_0 = arith.constant 0 : i32
    return %arg0, %c0_i32 : i32, i32
  }
  func.func @transform_1(%arg0: i32) -> (i32, i32) {
    %c0_i32 = arith.constant 0 : i32
    %c0_i32_0 = arith.constant 0 : i32
    %c0_i32_1 = arith.constant 0 : i32
    return %c0_i32, %c0_i32_0 : i32, i32
  }
  func.func @transform_2(%arg0: i32) -> (i32, i32) {
    %c0_i32 = arith.constant 0 : i32
    %c0_i32_0 = arith.constant 0 : i32
    %c0_i32_1 = arith.constant 0 : i32
    return %c0_i32, %c0_i32_0 : i32, i32
  }
  func.func @transform_3(%arg0: i32) -> (i32, i32) {
    %c0_i32 = arith.constant 0 : i32
    %c0_i32_0 = arith.constant 0 : i32
    %c0_i32_1 = arith.constant 0 : i32
    return %c0_i32, %c0_i32_0 : i32, i32
  }
  func.func @transform_4(%arg0: i32) -> (i32, i32) {
    %c0_i32 = arith.constant 0 : i32
    %c0_i32_0 = arith.constant 0 : i32
    %c0_i32_1 = arith.constant 0 : i32
    return %c0_i32, %c0_i32_0 : i32, i32
  }
  func.func @transform_5(%arg0: i32) -> (i32, i32) {
    %c0_i32 = arith.constant 0 : i32
    %c0_i32_0 = arith.constant 0 : i32
    %c0_i32_1 = arith.constant 0 : i32
    return %c0_i32, %c0_i32_0 : i32, i32
  }
  func.func @transform_6(%arg0: i32) -> (i32, i32) {
    %c0_i32 = arith.constant 0 : i32
    %c0_i32_0 = arith.constant 0 : i32
    %c0_i32_1 = arith.constant 0 : i32
    return %c0_i32, %c0_i32_0 : i32, i32
  }
  func.func @transform_7(%arg0: i32) -> (i32, i32) {
    %c0_i32 = arith.constant 0 : i32
    %c0_i32_0 = arith.constant 0 : i32
    %c0_i32_1 = arith.constant 0 : i32
    return %c0_i32, %c0_i32_0 : i32, i32
  }
  func.func @transform_8(%arg0: i32) -> (i32, i32) {
    %c0_i32 = arith.constant 0 : i32
    %c0_i32_0 = arith.constant 0 : i32
    %c0_i32_1 = arith.constant 0 : i32
    return %c0_i32, %c0_i32_0 : i32, i32
  }
  func.func @transform_9(%arg0: i32) -> (i32, i32) {
    %c0_i32 = arith.constant 0 : i32
    %c0_i32_0 = arith.constant 0 : i32
    return %arg0, %c0_i32 : i32, i32
  }
}

</mosaic_0001>

<llo_original>
// kernel: tpu_custom_call.1
$region0: #{tpu_custom_call.1}
  #allocation0 [shape = 'u32[]', space=smem, size = 0x4, offset = 0x4, fixed_abs, tag = 'smem constant byte address 0x4 - core index']
  #allocation1 [shape = 'u32[144,128]{1,0:T(1,128)}', space=vmem, size = 0x12000, scoped, tag = 'internal scratch']
  %s0 = inlined_call_operand.vmem [shape: f32[16,2], index: 0, kind: input, shape index: {}]
  %s1 = inlined_call_operand.vmem [shape: f32[2,512], index: 1, kind: input, shape index: {}]
  %s2 = inlined_call_operand.vmem [shape: f32[1,512], index: 2, kind: input, shape index: {}]
  %s3 = inlined_call_operand.hbm [shape: f32[512,512], index: 3, kind: input, shape index: {}]
  %s4 = inlined_call_operand.vmem [shape: f32[1,512], index: 4, kind: input, shape index: {}]
  %s5 = inlined_call_operand.hbm [shape: f32[512,512], index: 5, kind: input, shape index: {}]
  %s6 = inlined_call_operand.vmem [shape: f32[1,512], index: 6, kind: input, shape index: {}]
  %s7 = inlined_call_operand.hbm [shape: f32[512,128], index: 7, kind: input, shape index: {}]
  %s8 = inlined_call_operand.vmem [shape: f32[1,128], index: 8, kind: input, shape index: {}]
  %s9 = inlined_call_operand.hbm [shape: f32[16,128], index: 9, kind: output, shape index: {}]
  %s10 = sld [smem:[#allocation0]]
  $region58: #{tpu_custom_call.1} parent=0
    _
  %s12 = ssub.s32 1, %s10
  %s13 = scalar_select 0, %s12, %s10
  $region1: #{tpu_custom_call.1} parent=0
    #allocation2 [shape = 'u8[1048576]{0}', space=vmem, size = 0x100000, scoped, tag = 'input window, operand 3, single buffered']
    #allocation3 [shape = 's32[1]{0}', space=sflag, size = 0x4, scoped, tag = 'scoped memory for tpu_custom_call.1']
    #allocation4 [shape = 's32[1]{0}', space=sflag, size = 0x4, scoped, tag = 'scoped memory for tpu_custom_call.1']
    #allocation5 [shape = 'u8[1048576]{0}', space=vmem, size = 0x100000, scoped, tag = 'input window, operand 5, single buffered']
    #allocation6 [shape = 's32[1]{0}', space=sflag, size = 0x4, scoped, tag = 'scoped memory for tpu_custom_call.1']
    #allocation7 [shape = 'u8[262144]{0}', space=vmem, size = 0x40000, scoped, tag = 'input window, operand 7, single buffered']
    #allocation8 [shape = 'u8[8192]{0}', space=vmem, size = 0x2000, scoped, tag = 'output window, operand 0, single buffered']
    %14 = vsyncpa [#allocation3], 0
    %15 = vsyncpa [#allocation6], 0
    %16 = vsyncpa [#allocation4], 0
    // Predicated region
    $region2: #{tpu_custom_call.1} parent=1 // pred_check
      _
    $region3: #{tpu_custom_call.1} parent=1 // pred_check_branch
      %18 = sbr.rel (0) target = $region5
    $region4: #{tpu_custom_call.1} parent=1 // pred_region
      _
    $region5: #{tpu_custom_call.1} parent=1 // pred_fallthru
      _
    // Predicated region
    $region6: #{tpu_custom_call.1} parent=1 // pred_check
      _
    $region7: #{tpu_custom_call.1} parent=1 // pred_check_branch
      %20 = sbr.rel (0) target = $region9
    $region8: #{tpu_custom_call.1} parent=1 // pred_region
      _
    $region9: #{tpu_custom_call.1} parent=1 // pred_fallthru
      _
    // Predicated region
    $region10: #{tpu_custom_call.1} parent=1 // pred_check
      _
    $region11: #{tpu_custom_call.1} parent=1 // pred_check_branch
      %22 = sbr.rel (0) target = $region13
    $region12: #{tpu_custom_call.1} parent=1 // pred_region
      _
    $region13: #{tpu_custom_call.1} parent=1 // pred_fallthru
      _
    // Predicated region
    $region14: #{tpu_custom_call.1} parent=1 // pred_check
      _
    $region15: #{tpu_custom_call.1} parent=1 // pred_check_branch
      %24 = sbr.rel (0) target = $region17
    $region16: #{tpu_custom_call.1} parent=1 // pred_region
      %s26 = ssub.s32 32768, 32768
      %27 = vsyncadd [#allocation3], %s26
      %s28 = sshll.u32 [#allocation2], 4
      %s29 = int_to_ptr.vmem [resolvable:$true] %s28
      %34 = dma.hbm_to_vmem [thread:$0]  %s3, 32768, %s29, [#allocation3], 512, 512, 32
    $region17: #{tpu_custom_call.1} parent=1 // pred_fallthru
      _
    // Predicated region
    $region18: #{tpu_custom_call.1} parent=1 // pred_check
      _
    $region19: #{tpu_custom_call.1} parent=1 // pred_check_branch
      %36 = sbr.rel (0) target = $region21
    $region20: #{tpu_custom_call.1} parent=1 // pred_region
      _
    $region21: #{tpu_custom_call.1} parent=1 // pred_fallthru
      _
    // Predicated region
    $region22: #{tpu_custom_call.1} parent=1 // pred_check
      _
    $region23: #{tpu_custom_call.1} parent=1 // pred_check_branch
      %38 = sbr.rel (0) target = $region25
    $region24: #{tpu_custom_call.1} parent=1 // pred_region
      %s40 = ssub.s32 32768, 32768
      %41 = vsyncadd [#allocation6], %s40
      %s42 = sshll.u32 [#allocation5], 4
      %s43 = int_to_ptr.vmem [resolvable:$true] %s42
      %48 = dma.hbm_to_vmem [thread:$0]  %s5, 32768, %s43, [#allocation6], 512, 512, 32
    $region25: #{tpu_custom_call.1} parent=1 // pred_fallthru
      _
    // Predicated region
    $region26: #{tpu_custom_call.1} parent=1 // pred_check
      _
    $region27: #{tpu_custom_call.1} parent=1 // pred_check_branch
      %50 = sbr.rel (0) target = $region29
    $region28: #{tpu_custom_call.1} parent=1 // pred_region
      _
    $region29: #{tpu_custom_call.1} parent=1 // pred_fallthru
      _
    // Predicated region
    $region30: #{tpu_custom_call.1} parent=1 // pred_check
      _
    $region31: #{tpu_custom_call.1} parent=1 // pred_check_branch
      %52 = sbr.rel (0) target = $region33
    $region32: #{tpu_custom_call.1} parent=1 // pred_region
      %s54 = ssub.s32 8192, 8192
      %55 = vsyncadd [#allocation6], %s54
      %s56 = sshll.u32 [#allocation7], 4
      %s57 = int_to_ptr.vmem [resolvable:$true] %s56
      %62 = dma.hbm_to_vmem [thread:$0]  %s7, 8192, %s57, [#allocation6], 128, 128, 8
    $region33: #{tpu_custom_call.1} parent=1 // pred_fallthru
      _
    // Predicated region
    $region34: #{tpu_custom_call.1} parent=1 // pred_check
      _
    $region35: #{tpu_custom_call.1} parent=1 // pred_check_branch
      %64 = sbr.rel (0) target = $region37
    $region36: #{tpu_custom_call.1} parent=1 // pred_region
      _
    $region37: #{tpu_custom_call.1} parent=1 // pred_fallthru
      _
    // Predicated region
    $region38: #{tpu_custom_call.1} parent=1 // pred_check
      _
    $region39: #{tpu_custom_call.1} parent=1 // pred_check_branch
      %66 = sbr.rel (0) target = $region41
    $region40: #{tpu_custom_call.1} parent=1 // pred_region
      %67 = dma.done [#allocation3], 32768
    $region41: #{tpu_custom_call.1} parent=1 // pred_fallthru
      _
    // Predicated region
    $region42: #{tpu_custom_call.1} parent=1 // pred_check
      _
    $region43: #{tpu_custom_call.1} parent=1 // pred_check_branch
      %69 = sbr.rel (0) target = $region45
    $region44: #{tpu_custom_call.1} parent=1 // pred_region
      %70 = dma.done [#allocation6], 32768
    $region45: #{tpu_custom_call.1} parent=1 // pred_fallthru
      _
    // Predicated region
    $region46: #{tpu_custom_call.1} parent=1 // pred_check
      _
    $region47: #{tpu_custom_call.1} parent=1 // pred_check_branch
      %72 = sbr.rel (0) target = $region49
    $region48: #{tpu_custom_call.1} parent=1 // pred_region
      %73 = dma.done [#allocation6], 8192
    $region49: #{tpu_custom_call.1} parent=1 // pred_fallthru
      _
    %v74 = vld [vmem:[%s0] sm:$0xff]
    %v75 = vld [vmem:[%s0 + $0x8] sm:$0xff]
    %v76 = vld [vmem:[%s1] ss:$2 sm:$0xf]
    %78 = vset.pattern.permute.xlu0 0
    %79 = vperm.xlu0 %78, %v74
    %v80 = vpop.permute.xlu0 %79
    %83 = vset.pattern.permute.xlu0 0
    %84 = vperm.xlu0 %83, %v75
    %v85 = vpop.permute.xlu0 %84
    %v88 = vlaneseq
    %v89 = vshrl.u32 %v88, 7
    %v90 = vsub.s32 0, %v89
    %v91 = vrot.slane %v76, %v90
    %v92 = vlaneseq
    %v93 = vshrl.u32 %v92, 7
    %v94 = vsub.s32 1, %v93
    %v95 = vrot.slane %v76, %v94
    %v96 = vlaneseq
    %v97 = vshrl.u32 %v96, 7
    %v98 = vsub.s32 2, %v97
    %v99 = vrot.slane %v76, %v98
    %v100 = vlaneseq
    %v101 = vshrl.u32 %v100, 7
    %v102 = vsub.s32 3, %v101
    %v103 = vrot.slane %v76, %v102
    %v108 = vmul.f32 %v80, %v91
    %v109 = vmul.f32 %v80, %v95
    %v110 = vmul.f32 %v80, %v99
    %v111 = vmul.f32 %v80, %v103
    %v112 = vmul.f32 %v85, %v91
    %v113 = vmul.f32 %v85, %v95
    %v114 = vmul.f32 %v85, %v99
    %v115 = vmul.f32 %v85, %v103
    %s116 = scalar_lea.vmem %s1, 1
    %v117 = vld [vmem:[%s116] ss:$2 sm:$0xf]
    %118 = vset.pattern.permute.xlu0 1
    %119 = vperm.xlu0 %118, %v74
    %v120 = vpop.permute.xlu0 %119
    %122 = vset.pattern.permute.xlu0 1
    %123 = vperm.xlu0 %122, %v75
    %v124 = vpop.permute.xlu0 %123
    %v127 = vlaneseq
    %v128 = vshrl.u32 %v127, 7
    %v129 = vsub.s32 0, %v128
    %v130 = vrot.slane %v117, %v129
    %v131 = vlaneseq
    %v132 = vshrl.u32 %v131, 7
    %v133 = vsub.s32 1, %v132
    %v134 = vrot.slane %v117, %v133
    %v135 = vlaneseq
    %v136 = vshrl.u32 %v135, 7
    %v137 = vsub.s32 2, %v136
    %v138 = vrot.slane %v117, %v137
    %v139 = vlaneseq
    %v140 = vshrl.u32 %v139, 7
    %v141 = vsub.s32 3, %v140
    %v142 = vrot.slane %v117, %v141
    %v147 = vmul.f32 %v120, %v130
    %v148 = vmul.f32 %v120, %v134
    %v149 = vmul.f32 %v120, %v138
    %v150 = vmul.f32 %v120, %v142
    %v151 = vmul.f32 %v124, %v130
    %v152 = vmul.f32 %v124, %v134
    %v153 = vmul.f32 %v124, %v138
    %v154 = vmul.f32 %v124, %v142
    %v155 = vadd.f32 %v108, %v147
    %v156 = vadd.f32 %v109, %v148
    %v157 = vadd.f32 %v110, %v149
    %v158 = vadd.f32 %v111, %v150
    %v159 = vadd.f32 %v112, %v151
    %v160 = vadd.f32 %v113, %v152
    %v161 = vadd.f32 %v114, %v153
    %v162 = vadd.f32 %v115, %v154
    %v163 = vld [vmem:[%s2] sm:$0xf]
    %v165 = vlaneseq
    %v166 = vshrl.u32 %v165, 7
    %v167 = vsub.s32 0, %v166
    %v168 = vrot.slane %v163, %v167
    %v169 = vlaneseq
    %v170 = vshrl.u32 %v169, 7
    %v171 = vsub.s32 1, %v170
    %v172 = vrot.slane %v163, %v171
    %v173 = vlaneseq
    %v174 = vshrl.u32 %v173, 7
    %v175 = vsub.s32 2, %v174
    %v176 = vrot.slane %v163, %v175
    %v177 = vlaneseq
    %v178 = vshrl.u32 %v177, 7
    %v179 = vsub.s32 3, %v178
    %v180 = vrot.slane %v163, %v179
    %v185 = vadd.f32 %v155, %v168
    %v186 = vadd.f32 %v156, %v172
    %v187 = vadd.f32 %v157, %v176
    %v188 = vadd.f32 %v158, %v180
    %v189 = vadd.f32 %v159, %v168
    %v190 = vadd.f32 %v160, %v172
    %v191 = vadd.f32 %v161, %v176
    %v192 = vadd.f32 %v162, %v180
    %v193 = vmax.f32 %v185, 0.0
    %v194 = vmax.f32 %v186, 0.0
    %v195 = vmax.f32 %v187, 0.0
    %v196 = vmax.f32 %v188, 0.0
    %v197 = vmax.f32 %v189, 0.0
    %v198 = vmax.f32 %v190, 0.0
    %v199 = vmax.f32 %v191, 0.0
    %v200 = vmax.f32 %v192, 0.0
    %v201 = vld [vmem:[#allocation2] sm:$0xff]
    %v202 = vld [vmem:[#allocation2 + $0x8] sm:$0xff]
    %v203 = vld [vmem:[#allocation2 + $0x10] sm:$0xff]
    %v204 = vld [vmem:[#allocation2 + $0x18] sm:$0xff]
    %v205 = vld [vmem:[#allocation2 + $0x20] sm:$0xff]
    %v206 = vld [vmem:[#allocation2 + $0x28] sm:$0xff]
    %v207 = vld [vmem:[#allocation2 + $0x30] sm:$0xff]
    %v208 = vld [vmem:[#allocation2 + $0x38] sm:$0xff]
    %v209 = vld [vmem:[#allocation2 + $0x40] sm:$0xff]
    %v210 = vld [vmem:[#allocation2 + $0x48] sm:$0xff]
    %v211 = vld [vmem:[#allocation2 + $0x50] sm:$0xff]
    %v212 = vld [vmem:[#allocation2 + $0x58] sm:$0xff]
    %v213 = vld [vmem:[#allocation2 + $0x60] sm:$0xff]
    %v214 = vld [vmem:[#allocation2 + $0x68] sm:$0xff]
    %v215 = vld [vmem:[#allocation2 + $0x70] sm:$0xff]
    %v216 = vld [vmem:[#allocation2 + $0x78] sm:$0xff]
    %v217 = vld [vmem:[#allocation2 + $0x80] sm:$0xff]
    %v218 = vld [vmem:[#allocation2 + $0x88] sm:$0xff]
    %v219 = vld [vmem:[#allocation2 + $0x90] sm:$0xff]
    %v220 = vld [vmem:[#allocation2 + $0x98] sm:$0xff]
    %v221 = vld [vmem:[#allocation2 + $0xa0] sm:$0xff]
    %v222 = vld [vmem:[#allocation2 + $0xa8] sm:$0xff]
    %v223 = vld [vmem:[#allocation2 + $0xb0] sm:$0xff]
    %v224 = vld [vmem:[#allocation2 + $0xb8] sm:$0xff]
    %v225 = vld [vmem:[#allocation2 + $0xc0] sm:$0xff]
    %v226 = vld [vmem:[#allocation2 + $0xc8] sm:$0xff]
    %v227 = vld [vmem:[#allocation2 + $0xd0] sm:$0xff]
    %v228 = vld [vmem:[#allocation2 + $0xd8] sm:$0xff]
    %v229 = vld [vmem:[#allocation2 + $0xe0] sm:$0xff]
    %v230 = vld [vmem:[#allocation2 + $0xe8] sm:$0xff]
    %v231 = vld [vmem:[#allocation2 + $0xf0] sm:$0xff]
    %v232 = vld [vmem:[#allocation2 + $0xf8] sm:$0xff]
    %v233 = vld [vmem:[#allocation2 + $0x100] sm:$0xff]
    %v234 = vld [vmem:[#allocation2 + $0x108] sm:$0xff]
    %v235 = vld [vmem:[#allocation2 + $0x110] sm:$0xff]
    %v236 = vld [vmem:[#allocation2 + $0x118] sm:$0xff]
    %v237 = vld [vmem:[#allocation2 + $0x120] sm:$0xff]
    %v238 = vld [vmem:[#allocation2 + $0x128] sm:$0xff]
    %v239 = vld [vmem:[#allocation2 + $0x130] sm:$0xff]
    %v240 = vld [vmem:[#allocation2 + $0x138] sm:$0xff]
    %v241 = vld [vmem:[#allocation2 + $0x140] sm:$0xff]
    %v242 = vld [vmem:[#allocation2 + $0x148] sm:$0xff]
    %v243 = vld [vmem:[#allocation2 + $0x150] sm:$0xff]
    %v244 = vld [vmem:[#allocation2 + $0x158] sm:$0xff]
    %v245 = vld [vmem:[#allocation2 + $0x160] sm:$0xff]
    %v246 = vld [vmem:[#allocation2 + $0x168] sm:$0xff]
    %v247 = vld [vmem:[#allocation2 + $0x170] sm:$0xff]
    %v248 = vld [vmem:[#allocation2 + $0x178] sm:$0xff]
    %v249 = vld [vmem:[#allocation2 + $0x180] sm:$0xff]
    %v250 = vld [vmem:[#allocation2 + $0x188] sm:$0xff]
    %v251 = vld [vmem:[#allocation2 + $0x190] sm:$0xff]
    %v252 = vld [vmem:[#allocation2 + $0x198] sm:$0xff]
    %v253 = vld [vmem:[#allocation2 + $0x1a0] sm:$0xff]
    %v254 = vld [vmem:[#allocation2 + $0x1a8] sm:$0xff]
    %v255 = vld [vmem:[#allocation2 + $0x1b0] sm:$0xff]
    %v256 = vld [vmem:[#allocation2 + $0x1b8] sm:$0xff]
    %v257 = vld [vmem:[#allocation2 + $0x1c0] sm:$0xff]
    %v258 = vld [vmem:[#allocation2 + $0x1c8] sm:$0xff]
    %v259 = vld [vmem:[#allocation2 + $0x1d0] sm:$0xff]
    %v260 = vld [vmem:[#allocation2 + $0x1d8] sm:$0xff]
    %v261 = vld [vmem:[#allocation2 + $0x1e0] sm:$0xff]
    %v262 = vld [vmem:[#allocation2 + $0x1e8] sm:$0xff]
    %v263 = vld [vmem:[#allocation2 + $0x1f0] sm:$0xff]
    %v264 = vld [vmem:[#allocation2 + $0x1f8] sm:$0xff]
    %v265 = vld [vmem:[#allocation2 + $0x200] sm:$0xff]
    %v266 = vld [vmem:[#allocation2 + $0x208] sm:$0xff]
    %v267 = vld [vmem:[#allocation2 + $0x210] sm:$0xff]
    %v268 = vld [vmem:[#allocation2 + $0x218] sm:$0xff]
    %v269 = vld [vmem:[#allocation2 + $0x220] sm:$0xff]
    %v270 = vld [vmem:[#allocation2 + $0x228] sm:$0xff]
    %v271 = vld [vmem:[#allocation2 + $0x230] sm:$0xff]
    %v272 = vld [vmem:[#allocation2 + $0x238] sm:$0xff]
    %v273 = vld [vmem:[#allocation2 + $0x240] sm:$0xff]
    %v274 = vld [vmem:[#allocation2 + $0x248] sm:$0xff]
    %v275 = vld [vmem:[#allocation2 + $0x250] sm:$0xff]
    %v276 = vld [vmem:[#allocation2 + $0x258] sm:$0xff]
    %v277 = vld [vmem:[#allocation2 + $0x260] sm:$0xff]
    %v278 = vld [vmem:[#allocation2 + $0x268] sm:$0xff]
    %v279 = vld [vmem:[#allocation2 + $0x270] sm:$0xff]
    %v280 = vld [vmem:[#allocation2 + $0x278] sm:$0xff]
    %v281 = vld [vmem:[#allocation2 + $0x280] sm:$0xff]
    %v282 = vld [vmem:[#allocation2 + $0x288] sm:$0xff]
    %v283 = vld [vmem:[#allocation2 + $0x290] sm:$0xff]
    %v284 = vld [vmem:[#allocation2 + $0x298] sm:$0xff]
    %v285 = vld [vmem:[#allocation2 + $0x2a0] sm:$0xff]
    %v286 = vld [vmem:[#allocation2 + $0x2a8] sm:$0xff]
    %v287 = vld [vmem:[#allocation2 + $0x2b0] sm:$0xff]
    %v288 = vld [vmem:[#allocation2 + $0x2b8] sm:$0xff]
    %v289 = vld [vmem:[#allocation2 + $0x2c0] sm:$0xff]
    %v290 = vld [vmem:[#allocation2 + $0x2c8] sm:$0xff]
    %v291 = vld [vmem:[#allocation2 + $0x2d0] sm:$0xff]
    %v292 = vld [vmem:[#allocation2 + $0x2d8] sm:$0xff]
    %v293 = vld [vmem:[#allocation2 + $0x2e0] sm:$0xff]
    %v294 = vld [vmem:[#allocation2 + $0x2e8] sm:$0xff]
    %v295 = vld [vmem:[#allocation2 + $0x2f0] sm:$0xff]
    %v296 = vld [vmem:[#allocation2 + $0x2f8] sm:$0xff]
    %v297 = vld [vmem:[#allocation2 + $0x300] sm:$0xff]
    %v298 = vld [vmem:[#allocation2 + $0x308] sm:$0xff]
    %v299 = vld [vmem:[#allocation2 + $0x310] sm:$0xff]
    %v300 = vld [vmem:[#allocation2 + $0x318] sm:$0xff]
    %v301 = vld [vmem:[#allocation2 + $0x320] sm:$0xff]
    %v302 = vld [vmem:[#allocation2 + $0x328] sm:$0xff]
    %v303 = vld [vmem:[#allocation2 + $0x330] sm:$0xff]
    %v304 = vld [vmem:[#allocation2 + $0x338] sm:$0xff]
    %v305 = vld [vmem:[#allocation2 + $0x340] sm:$0xff]
    %v306 = vld [vmem:[#allocation2 + $0x348] sm:$0xff]
    %v307 = vld [vmem:[#allocation2 + $0x350] sm:$0xff]
    %v308 = vld [vmem:[#allocation2 + $0x358] sm:$0xff]
    %v309 = vld [vmem:[#allocation2 + $0x360] sm:$0xff]
    %v310 = vld [vmem:[#allocation2 + $0x368] sm:$0xff]
    %v311 = vld [vmem:[#allocation2 + $0x370] sm:$0xff]
    %v312 = vld [vmem:[#allocation2 + $0x378] sm:$0xff]
    %v313 = vld [vmem:[#allocation2 + $0x380] sm:$0xff]
    %v314 = vld [vmem:[#allocation2 + $0x388] sm:$0xff]
    %v315 = vld [vmem:[#allocation2 + $0x390] sm:$0xff]
    %v316 = vld [vmem:[#allocation2 + $0x398] sm:$0xff]
    %v317 = vld [vmem:[#allocation2 + $0x3a0] sm:$0xff]
    %v318 = vld [vmem:[#allocation2 + $0x3a8] sm:$0xff]
    %v319 = vld [vmem:[#allocation2 + $0x3b0] sm:$0xff]
    %v320 = vld [vmem:[#allocation2 + $0x3b8] sm:$0xff]
    %v321 = vld [vmem:[#allocation2 + $0x3c0] sm:$0xff]
    %v322 = vld [vmem:[#allocation2 + $0x3c8] sm:$0xff]
    %v323 = vld [vmem:[#allocation2 + $0x3d0] sm:$0xff]
    %v324 = vld [vmem:[#allocation2 + $0x3d8] sm:$0xff]
    %v325 = vld [vmem:[#allocation2 + $0x3e0] sm:$0xff]
    %v326 = vld [vmem:[#allocation2 + $0x3e8] sm:$0xff]
    %v327 = vld [vmem:[#allocation2 + $0x3f0] sm:$0xff]
    %v328 = vld [vmem:[#allocation2 + $0x3f8] sm:$0xff]
    %v329 = vld [vmem:[#allocation2 + $0x400] sm:$0xff]
    %v330 = vld [vmem:[#allocation2 + $0x408] sm:$0xff]
    %v331 = vld [vmem:[#allocation2 + $0x410] sm:$0xff]
    %v332 = vld [vmem:[#allocation2 + $0x418] sm:$0xff]
    %v333 = vld [vmem:[#allocation2 + $0x420] sm:$0xff]
    %v334 = vld [vmem:[#allocation2 + $0x428] sm:$0xff]
    %v335 = vld [vmem:[#allocation2 + $0x430] sm:$0xff]
    %v336 = vld [vmem:[#allocation2 + $0x438] sm:$0xff]
    %v337 = vld [vmem:[#allocation2 + $0x440] sm:$0xff]
    %v338 = vld [vmem:[#allocation2 + $0x448] sm:$0xff]
    %v339 = vld [vmem:[#allocation2 + $0x450] sm:$0xff]
    %v340 = vld [vmem:[#allocation2 + $0x458] sm:$0xff]
    %v341 = vld [vmem:[#allocation2 + $0x460] sm:$0xff]
    %v342 = vld [vmem:[#allocation2 + $0x468] sm:$0xff]
    %v343 = vld [vmem:[#allocation2 + $0x470] sm:$0xff]
    %v344 = vld [vmem:[#allocation2 + $0x478] sm:$0xff]
    %v345 = vld [vmem:[#allocation2 + $0x480] sm:$0xff]
    %v346 = vld [vmem:[#allocation2 + $0x488] sm:$0xff]
    %v347 = vld [vmem:[#allocation2 + $0x490] sm:$0xff]
    %v348 = vld [vmem:[#allocation2 + $0x498] sm:$0xff]
    %v349 = vld [vmem:[#allocation2 + $0x4a0] sm:$0xff]
    %v350 = vld [vmem:[#allocation2 + $0x4a8] sm:$0xff]
    %v351 = vld [vmem:[#allocation2 + $0x4b0] sm:$0xff]
    %v352 = vld [vmem:[#allocation2 + $0x4b8] sm:$0xff]
    %v353 = vld [vmem:[#allocation2 + $0x4c0] sm:$0xff]
    %v354 = vld [vmem:[#allocation2 + $0x4c8] sm:$0xff]
    %v355 = vld [vmem:[#allocation2 + $0x4d0] sm:$0xff]
    %v356 = vld [vmem:[#allocation2 + $0x4d8] sm:$0xff]
    %v357 = vld [vmem:[#allocation2 + $0x4e0] sm:$0xff]
    %v358 = vld [vmem:[#allocation2 + $0x4e8] sm:$0xff]
    %v359 = vld [vmem:[#allocation2 + $0x4f0] sm:$0xff]
    %v360 = vld [vmem:[#allocation2 + $0x4f8] sm:$0xff]
    %v361 = vld [vmem:[#allocation2 + $0x500] sm:$0xff]
    %v362 = vld [vmem:[#allocation2 + $0x508] sm:$0xff]
    %v363 = vld [vmem:[#allocation2 + $0x510] sm:$0xff]
    %v364 = vld [vmem:[#allocation2 + $0x518] sm:$0xff]
    %v365 = vld [vmem:[#allocation2 + $0x520] sm:$0xff]
    %v366 = vld [vmem:[#allocation2 + $0x528] sm:$0xff]
    %v367 = vld [vmem:[#allocation2 + $0x530] sm:$0xff]
    %v368 = vld [vmem:[#allocation2 + $0x538] sm:$0xff]
    %v369 = vld [vmem:[#allocation2 + $0x540] sm:$0xff]
    %v370 = vld [vmem:[#allocation2 + $0x548] sm:$0xff]
    %v371 = vld [vmem:[#allocation2 + $0x550] sm:$0xff]
    %v372 = vld [vmem:[#allocation2 + $0x558] sm:$0xff]
    %v373 = vld [vmem:[#allocation2 + $0x560] sm:$0xff]
    %v374 = vld [vmem:[#allocation2 + $0x568] sm:$0xff]
    %v375 = vld [vmem:[#allocation2 + $0x570] sm:$0xff]
    %v376 = vld [vmem:[#allocation2 + $0x578] sm:$0xff]
    %v377 = vld [vmem:[#allocation2 + $0x580] sm:$0xff]
    %v378 = vld [vmem:[#allocation2 + $0x588] sm:$0xff]
    %v379 = vld [vmem:[#allocation2 + $0x590] sm:$0xff]
    %v380 = vld [vmem:[#allocation2 + $0x598] sm:$0xff]
    %v381 = vld [vmem:[#allocation2 + $0x5a0] sm:$0xff]
    %v382 = vld [vmem:[#allocation2 + $0x5a8] sm:$0xff]
    %v383 = vld [vmem:[#allocation2 + $0x5b0] sm:$0xff]
    %v384 = vld [vmem:[#allocation2 + $0x5b8] sm:$0xff]
    %v385 = vld [vmem:[#allocation2 + $0x5c0] sm:$0xff]
    %v386 = vld [vmem:[#allocation2 + $0x5c8] sm:$0xff]
    %v387 = vld [vmem:[#allocation2 + $0x5d0] sm:$0xff]
    %v388 = vld [vmem:[#allocation2 + $0x5d8] sm:$0xff]
    %v389 = vld [vmem:[#allocation2 + $0x5e0] sm:$0xff]
    %v390 = vld [vmem:[#allocation2 + $0x5e8] sm:$0xff]
    %v391 = vld [vmem:[#allocation2 + $0x5f0] sm:$0xff]
    %v392 = vld [vmem:[#allocation2 + $0x5f8] sm:$0xff]
    %v393 = vld [vmem:[#allocation2 + $0x600] sm:$0xff]
    %v394 = vld [vmem:[#allocation2 + $0x608] sm:$0xff]
    %v395 = vld [vmem:[#allocation2 + $0x610] sm:$0xff]
    %v396 = vld [vmem:[#allocation2 + $0x618] sm:$0xff]
    %v397 = vld [vmem:[#allocation2 + $0x620] sm:$0xff]
    %v398 = vld [vmem:[#allocation2 + $0x628] sm:$0xff]
    %v399 = vld [vmem:[#allocation2 + $0x630] sm:$0xff]
    %v400 = vld [vmem:[#allocation2 + $0x638] sm:$0xff]
    %v401 = vld [vmem:[#allocation2 + $0x640] sm:$0xff]
    %v402 = vld [vmem:[#allocation2 + $0x648] sm:$0xff]
    %v403 = vld [vmem:[#allocation2 + $0x650] sm:$0xff]
    %v404 = vld [vmem:[#allocation2 + $0x658] sm:$0xff]
    %v405 = vld [vmem:[#allocation2 + $0x660] sm:$0xff]
    %v406 = vld [vmem:[#allocation2 + $0x668] sm:$0xff]
    %v407 = vld [vmem:[#allocation2 + $0x670] sm:$0xff]
    %v408 = vld [vmem:[#allocation2 + $0x678] sm:$0xff]
    %v409 = vld [vmem:[#allocation2 + $0x680] sm:$0xff]
    %v410 = vld [vmem:[#allocation2 + $0x688] sm:$0xff]
    %v411 = vld [vmem:[#allocation2 + $0x690] sm:$0xff]
    %v412 = vld [vmem:[#allocation2 + $0x698] sm:$0xff]
    %v413 = vld [vmem:[#allocation2 + $0x6a0] sm:$0xff]
    %v414 = vld [vmem:[#allocation2 + $0x6a8] sm:$0xff]
    %v415 = vld [vmem:[#allocation2 + $0x6b0] sm:$0xff]
    %v416 = vld [vmem:[#allocation2 + $0x6b8] sm:$0xff]
    %v417 = vld [vmem:[#allocation2 + $0x6c0] sm:$0xff]
    %v418 = vld [vmem:[#allocation2 + $0x6c8] sm:$0xff]
    %v419 = vld [vmem:[#allocation2 + $0x6d0] sm:$0xff]
    %v420 = vld [vmem:[#allocation2 + $0x6d8] sm:$0xff]
    %v421 = vld [vmem:[#allocation2 + $0x6e0] sm:$0xff]
    %v422 = vld [vmem:[#allocation2 + $0x6e8] sm:$0xff]
    %v423 = vld [vmem:[#allocation2 + $0x6f0] sm:$0xff]
    %v424 = vld [vmem:[#allocation2 + $0x6f8] sm:$0xff]
    %v425 = vld [vmem:[#allocation2 + $0x700] sm:$0xff]
    %v426 = vld [vmem:[#allocation2 + $0x708] sm:$0xff]
    %v427 = vld [vmem:[#allocation2 + $0x710] sm:$0xff]
    %v428 = vld [vmem:[#allocation2 + $0x718] sm:$0xff]
    %v429 = vld [vmem:[#allocation2 + $0x720] sm:$0xff]
    %v430 = vld [vmem:[#allocation2 + $0x728] sm:$0xff]
    %v431 = vld [vmem:[#allocation2 + $0x730] sm:$0xff]
    %v432 = vld [vmem:[#allocation2 + $0x738] sm:$0xff]
    %v433 = vld [vmem:[#allocation2 + $0x740] sm:$0xff]
    %v434 = vld [vmem:[#allocation2 + $0x748] sm:$0xff]
    %v435 = vld [vmem:[#allocation2 + $0x750] sm:$0xff]
    %v436 = vld [vmem:[#allocation2 + $0x758] sm:$0xff]
    %v437 = vld [vmem:[#allocation2 + $0x760] sm:$0xff]
    %v438 = vld [vmem:[#allocation2 + $0x768] sm:$0xff]
    %v439 = vld [vmem:[#allocation2 + $0x770] sm:$0xff]
    %v440 = vld [vmem:[#allocation2 + $0x778] sm:$0xff]
    %v441 = vld [vmem:[#allocation2 + $0x780] sm:$0xff]
    %v442 = vld [vmem:[#allocation2 + $0x788] sm:$0xff]
    %v443 = vld [vmem:[#allocation2 + $0x790] sm:$0xff]
    %v444 = vld [vmem:[#allocation2 + $0x798] sm:$0xff]
    %v445 = vld [vmem:[#allocation2 + $0x7a0] sm:$0xff]
    %v446 = vld [vmem:[#allocation2 + $0x7a8] sm:$0xff]
    %v447 = vld [vmem:[#allocation2 + $0x7b0] sm:$0xff]
    %v448 = vld [vmem:[#allocation2 + $0x7b8] sm:$0xff]
    %v449 = vld [vmem:[#allocation2 + $0x7c0] sm:$0xff]
    %v450 = vld [vmem:[#allocation2 + $0x7c8] sm:$0xff]
    %v451 = vld [vmem:[#allocation2 + $0x7d0] sm:$0xff]
    %v452 = vld [vmem:[#allocation2 + $0x7d8] sm:$0xff]
    %v453 = vld [vmem:[#allocation2 + $0x7e0] sm:$0xff]
    %v454 = vld [vmem:[#allocation2 + $0x7e8] sm:$0xff]
    %v455 = vld [vmem:[#allocation2 + $0x7f0] sm:$0xff]
    %v456 = vld [vmem:[#allocation2 + $0x7f8] sm:$0xff]
    %v457 = vld [vmem:[%s4] sm:$0xf]
    %v459 = vlaneseq
    %v460 = vshrl.u32 %v459, 7
    %v461 = vsub.s32 0, %v460
    %v462 = vrot.slane %v457, %v461
    %v463 = vlaneseq
    %v464 = vshrl.u32 %v463, 7
    %v465 = vsub.s32 1, %v464
    %v466 = vrot.slane %v457, %v465
    %v467 = vlaneseq
    %v468 = vshrl.u32 %v467, 7
    %v469 = vsub.s32 2, %v468
    %v470 = vrot.slane %v457, %v469
    %v471 = vlaneseq
    %v472 = vshrl.u32 %v471, 7
    %v473 = vsub.s32 3, %v472
    %v474 = vrot.slane %v457, %v473
    %479 = vmatprep.subr.mxu0 %v202
    %480 = vmatpush1.msra.mxu0 %v201
    %481 = vmatprep.subr.mxu0 %v206
    %482 = vmatpush1.msra.mxu0 %v205
    %483 = vmatprep.subr.mxu0 %v210
    %484 = vmatpush1.msra.mxu0 %v209
    %485 = vmatprep.subr.mxu0 %v214
    %486 = vmatpush1.msra.mxu0 %v213
    %487 = vmatprep.subr.mxu0 %v218
    %488 = vmatpush1.msra.mxu0 %v217
    %489 = vmatprep.subr.mxu0 %v222
    %490 = vmatpush1.msra.mxu0 %v221
    %491 = vmatprep.subr.mxu0 %v226
    %492 = vmatpush1.msra.mxu0 %v225
    %493 = vmatprep.subr.mxu0 %v230
    %494 = vmatpush1.msra.mxu0 %v229
    %495 = vmatprep.subr.mxu0 %v234
    %496 = vmatpush1.msra.mxu0 %v233
    %497 = vmatprep.subr.mxu0 %v238
    %498 = vmatpush1.msra.mxu0 %v237
    %499 = vmatprep.subr.mxu0 %v242
    %500 = vmatpush1.msra.mxu0 %v241
    %501 = vmatprep.subr.mxu0 %v246
    %502 = vmatpush1.msra.mxu0 %v245
    %503 = vmatprep.subr.mxu0 %v250
    %504 = vmatpush1.msra.mxu0 %v249
    %505 = vmatprep.subr.mxu0 %v254
    %506 = vmatpush1.msra.mxu0 %v253
    %507 = vmatprep.subr.mxu0 %v258
    %508 = vmatpush1.msra.mxu0 %v257
    %509 = vmatprep.subr.mxu0 %v262
    %510 = vmatpush1.msra.mxu0 %v261
    %511 = vmatprep.subr.mxu0 %v266
    %512 = vmatpush1.msra.mxu0 %v265
    %513 = vmatprep.subr.mxu0 %v270
    %514 = vmatpush1.msra.mxu0 %v269
    %515 = vmatprep.subr.mxu0 %v274
    %516 = vmatpush1.msra.mxu0 %v273
    %517 = vmatprep.subr.mxu0 %v278
    %518 = vmatpush1.msra.mxu0 %v277
    %519 = vmatprep.subr.mxu0 %v282
    %520 = vmatpush1.msra.mxu0 %v281
    %521 = vmatprep.subr.mxu0 %v286
    %522 = vmatpush1.msra.mxu0 %v285
    %523 = vmatprep.subr.mxu0 %v290
    %524 = vmatpush1.msra.mxu0 %v289
    %525 = vmatprep.subr.mxu0 %v294
    %526 = vmatpush1.msra.mxu0 %v293
    %527 = vmatprep.subr.mxu0 %v298
    %528 = vmatpush1.msra.mxu0 %v297
    %529 = vmatprep.subr.mxu0 %v302
    %530 = vmatpush1.msra.mxu0 %v301
    %531 = vmatprep.subr.mxu0 %v306
    %532 = vmatpush1.msra.mxu0 %v305
    %533 = vmatprep.subr.mxu0 %v310
    %534 = vmatpush1.msra.mxu0 %v309
    %535 = vmatprep.subr.mxu0 %v314
    %536 = vmatpush1.msra.mxu0 %v313
    %537 = vmatprep.subr.mxu0 %v318
    %538 = vmatpush1.msra.mxu0 %v317
    %539 = vmatprep.subr.mxu0 %v322
    %540 = vmatpush1.msra.mxu0 %v321
    %541 = vmatprep.subr.mxu0 %v326
    %542 = vmatpush1.msra.mxu0 %v325
    %543 = vmatprep.mubr.f32.mxu0 %v194
    %544 = vmatmul.mubr.f32.gmra.mrb[0].mxu0 %v193
    %v545 = vpop.f32.mrb[0].mxu0
    %v546 = vadd.f32 %v462, %v545
    %v547 = vpop.f32.mrb[0].mxu0
    %v548 = vadd.f32 %v466, %v547
    %549 = vmatprep.mubr.f32.mxu0 %v198
    %550 = vmatmul.mubr.f32.gmra.mrb[0].mxu0 %v197
    %v551 = vpop.f32.mrb[0].mxu0
    %v552 = vadd.f32 %v462, %v551
    %v553 = vpop.f32.mrb[0].mxu0
    %v554 = vadd.f32 %v466, %v553
    %555 = vdwg.mxu0
    %556 = vmatprep.subr.mxu0 %v330
    %557 = vmatpush1.msra.mxu0 %v329
    %558 = vmatprep.subr.mxu0 %v334
    %559 = vmatpush1.msra.mxu0 %v333
    %560 = vmatprep.subr.mxu0 %v338
    %561 = vmatpush1.msra.mxu0 %v337
    %562 = vmatprep.subr.mxu0 %v342
    %563 = vmatpush1.msra.mxu0 %v341
    %564 = vmatprep.subr.mxu0 %v346
    %565 = vmatpush1.msra.mxu0 %v345
    %566 = vmatprep.subr.mxu0 %v350
    %567 = vmatpush1.msra.mxu0 %v349
    %568 = vmatprep.subr.mxu0 %v354
    %569 = vmatpush1.msra.mxu0 %v353
    %570 = vmatprep.subr.mxu0 %v358
    %571 = vmatpush1.msra.mxu0 %v357
    %572 = vmatprep.subr.mxu0 %v362
    %573 = vmatpush1.msra.mxu0 %v361
    %574 = vmatprep.subr.mxu0 %v366
    %575 = vmatpush1.msra.mxu0 %v365
    %576 = vmatprep.subr.mxu0 %v370
    %577 = vmatpush1.msra.mxu0 %v369
    %578 = vmatprep.subr.mxu0 %v374
    %579 = vmatpush1.msra.mxu0 %v373
    %580 = vmatprep.subr.mxu0 %v378
    %581 = vmatpush1.msra.mxu0 %v377
    %582 = vmatprep.subr.mxu0 %v382
    %583 = vmatpush1.msra.mxu0 %v381
    %584 = vmatprep.subr.mxu0 %v386
    %585 = vmatpush1.msra.mxu0 %v385
    %586 = vmatprep.subr.mxu0 %v390
    %587 = vmatpush1.msra.mxu0 %v389
    %588 = vmatprep.subr.mxu0 %v394
    %589 = vmatpush1.msra.mxu0 %v393
    %590 = vmatprep.subr.mxu0 %v398
    %591 = vmatpush1.msra.mxu0 %v397
    %592 = vmatprep.subr.mxu0 %v402
    %593 = vmatpush1.msra.mxu0 %v401
    %594 = vmatprep.subr.mxu0 %v406
    %595 = vmatpush1.msra.mxu0 %v405
    %596 = vmatprep.subr.mxu0 %v410
    %597 = vmatpush1.msra.mxu0 %v409
    %598 = vmatprep.subr.mxu0 %v414
    %599 = vmatpush1.msra.mxu0 %v413
    %600 = vmatprep.subr.mxu0 %v418
    %601 = vmatpush1.msra.mxu0 %v417
    %602 = vmatprep.subr.mxu0 %v422
    %603 = vmatpush1.msra.mxu0 %v421
    %604 = vmatprep.subr.mxu0 %v426
    %605 = vmatpush1.msra.mxu0 %v425
    %606 = vmatprep.subr.mxu0 %v430
    %607 = vmatpush1.msra.mxu0 %v429
    %608 = vmatprep.subr.mxu0 %v434
    %609 = vmatpush1.msra.mxu0 %v433
    %610 = vmatprep.subr.mxu0 %v438
    %611 = vmatpush1.msra.mxu0 %v437
    %612 = vmatprep.subr.mxu0 %v442
    %613 = vmatpush1.msra.mxu0 %v441
    %614 = vmatprep.subr.mxu0 %v446
    %615 = vmatpush1.msra.mxu0 %v445
    %616 = vmatprep.subr.mxu0 %v450
    %617 = vmatpush1.msra.mxu0 %v449
    %618 = vmatprep.subr.mxu0 %v454
    %619 = vmatpush1.msra.mxu0 %v453
    %620 = vmatprep.mubr.f32.mxu0 %v196
    %621 = vmatmul.mubr.f32.gmra.mrb[0].mxu0 %v195
    %v622 = vpop.f32.mrb[0].mxu0
    %v623 = vadd.f32 %v546, %v622
    %v624 = vpop.f32.mrb[0].mxu0
    %v625 = vadd.f32 %v548, %v624
    %626 = vmatprep.mubr.f32.mxu0 %v200
    %627 = vmatmul.mubr.f32.gmra.mrb[0].mxu0 %v199
    %v628 = vpop.f32.mrb[0].mxu0
    %v629 = vadd.f32 %v552, %v628
    %v630 = vpop.f32.mrb[0].mxu0
    %v631 = vadd.f32 %v554, %v630
    %632 = vdwg.mxu0
    %633 = vmatprep.subr.mxu0 %v204
    %634 = vmatpush1.msra.mxu0 %v203
    %635 = vmatprep.subr.mxu0 %v208
    %636 = vmatpush1.msra.mxu0 %v207
    %637 = vmatprep.subr.mxu0 %v212
    %638 = vmatpush1.msra.mxu0 %v211
    %639 = vmatprep.subr.mxu0 %v216
    %640 = vmatpush1.msra.mxu0 %v215
    %641 = vmatprep.subr.mxu0 %v220
    %642 = vmatpush1.msra.mxu0 %v219
    %643 = vmatprep.subr.mxu0 %v224
    %644 = vmatpush1.msra.mxu0 %v223
    %645 = vmatprep.subr.mxu0 %v228
    %646 = vmatpush1.msra.mxu0 %v227
    %647 = vmatprep.subr.mxu0 %v232
    %648 = vmatpush1.msra.mxu0 %v231
    %649 = vmatprep.subr.mxu0 %v236
    %650 = vmatpush1.msra.mxu0 %v235
    %651 = vmatprep.subr.mxu0 %v240
    %652 = vmatpush1.msra.mxu0 %v239
    %653 = vmatprep.subr.mxu0 %v244
    %654 = vmatpush1.msra.mxu0 %v243
    %655 = vmatprep.subr.mxu0 %v248
    %656 = vmatpush1.msra.mxu0 %v247
    %657 = vmatprep.subr.mxu0 %v252
    %658 = vmatpush1.msra.mxu0 %v251
    %659 = vmatprep.subr.mxu0 %v256
    %660 = vmatpush1.msra.mxu0 %v255
    %661 = vmatprep.subr.mxu0 %v260
    %662 = vmatpush1.msra.mxu0 %v259
    %663 = vmatprep.subr.mxu0 %v264
    %664 = vmatpush1.msra.mxu0 %v263
    %665 = vmatprep.subr.mxu0 %v268
    %666 = vmatpush1.msra.mxu0 %v267
    %667 = vmatprep.subr.mxu0 %v272
    %668 = vmatpush1.msra.mxu0 %v271
    %669 = vmatprep.subr.mxu0 %v276
    %670 = vmatpush1.msra.mxu0 %v275
    %671 = vmatprep.subr.mxu0 %v280
    %672 = vmatpush1.msra.mxu0 %v279
    %673 = vmatprep.subr.mxu0 %v284
    %674 = vmatpush1.msra.mxu0 %v283
    %675 = vmatprep.subr.mxu0 %v288
    %676 = vmatpush1.msra.mxu0 %v287
    %677 = vmatprep.subr.mxu0 %v292
    %678 = vmatpush1.msra.mxu0 %v291
    %679 = vmatprep.subr.mxu0 %v296
    %680 = vmatpush1.msra.mxu0 %v295
    %681 = vmatprep.subr.mxu0 %v300
    %682 = vmatpush1.msra.mxu0 %v299
    %683 = vmatprep.subr.mxu0 %v304
    %684 = vmatpush1.msra.mxu0 %v303
    %685 = vmatprep.subr.mxu0 %v308
    %686 = vmatpush1.msra.mxu0 %v307
    %687 = vmatprep.subr.mxu0 %v312
    %688 = vmatpush1.msra.mxu0 %v311
    %689 = vmatprep.subr.mxu0 %v316
    %690 = vmatpush1.msra.mxu0 %v315
    %691 = vmatprep.subr.mxu0 %v320
    %692 = vmatpush1.msra.mxu0 %v319
    %693 = vmatprep.subr.mxu0 %v324
    %694 = vmatpush1.msra.mxu0 %v323
    %695 = vmatprep.subr.mxu0 %v328
    %696 = vmatpush1.msra.mxu0 %v327
    %697 = vmatprep.mubr.f32.mxu0 %v194
    %698 = vmatmul.mubr.f32.gmra.mrb[0].mxu0 %v193
    %v699 = vpop.f32.mrb[0].mxu0
    %v700 = vadd.f32 %v470, %v699
    %v701 = vpop.f32.mrb[0].mxu0
    %v702 = vadd.f32 %v474, %v701
    %703 = vmatprep.mubr.f32.mxu0 %v198
    %704 = vmatmul.mubr.f32.gmra.mrb[0].mxu0 %v197
    %v705 = vpop.f32.mrb[0].mxu0
    %v706 = vadd.f32 %v470, %v705
    %v707 = vpop.f32.mrb[0].mxu0
    %v708 = vadd.f32 %v474, %v707
    %709 = vdwg.mxu0
    %710 = vmatprep.subr.mxu0 %v332
    %711 = vmatpush1.msra.mxu0 %v331
    %712 = vmatprep.subr.mxu0 %v336
    %713 = vmatpush1.msra.mxu0 %v335
    %714 = vmatprep.subr.mxu0 %v340
    %715 = vmatpush1.msra.mxu0 %v339
    %716 = vmatprep.subr.mxu0 %v344
    %717 = vmatpush1.msra.mxu0 %v343
    %718 = vmatprep.subr.mxu0 %v348
    %719 = vmatpush1.msra.mxu0 %v347
    %720 = vmatprep.subr.mxu0 %v352
    %721 = vmatpush1.msra.mxu0 %v351
    %722 = vmatprep.subr.mxu0 %v356
    %723 = vmatpush1.msra.mxu0 %v355
    %724 = vmatprep.subr.mxu0 %v360
    %725 = vmatpush1.msra.mxu0 %v359
    %726 = vmatprep.subr.mxu0 %v364
    %727 = vmatpush1.msra.mxu0 %v363
    %728 = vmatprep.subr.mxu0 %v368
    %729 = vmatpush1.msra.mxu0 %v367
    %730 = vmatprep.subr.mxu0 %v372
    %731 = vmatpush1.msra.mxu0 %v371
    %732 = vmatprep.subr.mxu0 %v376
    %733 = vmatpush1.msra.mxu0 %v375
    %734 = vmatprep.subr.mxu0 %v380
    %735 = vmatpush1.msra.mxu0 %v379
    %736 = vmatprep.subr.mxu0 %v384
    %737 = vmatpush1.msra.mxu0 %v383
    %738 = vmatprep.subr.mxu0 %v388
    %739 = vmatpush1.msra.mxu0 %v387
    %740 = vmatprep.subr.mxu0 %v392
    %741 = vmatpush1.msra.mxu0 %v391
    %742 = vmatprep.subr.mxu0 %v396
    %743 = vmatpush1.msra.mxu0 %v395
    %744 = vmatprep.subr.mxu0 %v400
    %745 = vmatpush1.msra.mxu0 %v399
    %746 = vmatprep.subr.mxu0 %v404
    %747 = vmatpush1.msra.mxu0 %v403
    %748 = vmatprep.subr.mxu0 %v408
    %749 = vmatpush1.msra.mxu0 %v407
    %750 = vmatprep.subr.mxu0 %v412
    %751 = vmatpush1.msra.mxu0 %v411
    %752 = vmatprep.subr.mxu0 %v416
    %753 = vmatpush1.msra.mxu0 %v415
    %754 = vmatprep.subr.mxu0 %v420
    %755 = vmatpush1.msra.mxu0 %v419
    %756 = vmatprep.subr.mxu0 %v424
    %757 = vmatpush1.msra.mxu0 %v423
    %758 = vmatprep.subr.mxu0 %v428
    %759 = vmatpush1.msra.mxu0 %v427
    %760 = vmatprep.subr.mxu0 %v432
    %761 = vmatpush1.msra.mxu0 %v431
    %762 = vmatprep.subr.mxu0 %v436
    %763 = vmatpush1.msra.mxu0 %v435
    %764 = vmatprep.subr.mxu0 %v440
    %765 = vmatpush1.msra.mxu0 %v439
    %766 = vmatprep.subr.mxu0 %v444
    %767 = vmatpush1.msra.mxu0 %v443
    %768 = vmatprep.subr.mxu0 %v448
    %769 = vmatpush1.msra.mxu0 %v447
    %770 = vmatprep.subr.mxu0 %v452
    %771 = vmatpush1.msra.mxu0 %v451
    %772 = vmatprep.subr.mxu0 %v456
    %773 = vmatpush1.msra.mxu0 %v455
    %774 = vmatprep.mubr.f32.mxu0 %v196
    %775 = vmatmul.mubr.f32.gmra.mrb[0].mxu0 %v195
    %v776 = vpop.f32.mrb[0].mxu0
    %v777 = vadd.f32 %v700, %v776
    %v778 = vpop.f32.mrb[0].mxu0
    %v779 = vadd.f32 %v702, %v778
    %780 = vmatprep.mubr.f32.mxu0 %v200
    %781 = vmatmul.mubr.f32.gmra.mrb[0].mxu0 %v199
    %v782 = vpop.f32.mrb[0].mxu0
    %v783 = vadd.f32 %v706, %v782
    %v784 = vpop.f32.mrb[0].mxu0
    %v785 = vadd.f32 %v708, %v784
    %786 = vdwg.mxu0
    %v787 = vmax.f32 %v623, 0.0
    %v788 = vmax.f32 %v625, 0.0
    %v789 = vmax.f32 %v777, 0.0
    %v790 = vmax.f32 %v779, 0.0
    %v791 = vmax.f32 %v629, 0.0
    %v792 = vmax.f32 %v631, 0.0
    %v793 = vmax.f32 %v783, 0.0
    %v794 = vmax.f32 %v785, 0.0
    %v795 = vld [vmem:[#allocation5] sm:$0xff]
    %v796 = vld [vmem:[#allocation5 + $0x8] sm:$0xff]
    %v797 = vld [vmem:[#allocation5 + $0x10] sm:$0xff]
    %v798 = vld [vmem:[#allocation5 + $0x18] sm:$0xff]
    %v799 = vld [vmem:[#allocation5 + $0x20] sm:$0xff]
    %v800 = vld [vmem:[#allocation5 + $0x28] sm:$0xff]
    %v801 = vld [vmem:[#allocation5 + $0x30] sm:$0xff]
    %v802 = vld [vmem:[#allocation5 + $0x38] sm:$0xff]
    %v803 = vld [vmem:[#allocation5 + $0x40] sm:$0xff]
    %v804 = vld [vmem:[#allocation5 + $0x48] sm:$0xff]
    %v805 = vld [vmem:[#allocation5 + $0x50] sm:$0xff]
    %v806 = vld [vmem:[#allocation5 + $0x58] sm:$0xff]
    %v807 = vld [vmem:[#allocation5 + $0x60] sm:$0xff]
    %v808 = vld [vmem:[#allocation5 + $0x68] sm:$0xff]
    %v809 = vld [vmem:[#allocation5 + $0x70] sm:$0xff]
    %v810 = vld [vmem:[#allocation5 + $0x78] sm:$0xff]
    %v811 = vld [vmem:[#allocation5 + $0x80] sm:$0xff]
    %v812 = vld [vmem:[#allocation5 + $0x88] sm:$0xff]
    %v813 = vld [vmem:[#allocation5 + $0x90] sm:$0xff]
    %v814 = vld [vmem:[#allocation5 + $0x98] sm:$0xff]
    %v815 = vld [vmem:[#allocation5 + $0xa0] sm:$0xff]
    %v816 = vld [vmem:[#allocation5 + $0xa8] sm:$0xff]
    %v817 = vld [vmem:[#allocation5 + $0xb0] sm:$0xff]
    %v818 = vld [vmem:[#allocation5 + $0xb8] sm:$0xff]
    %v819 = vld [vmem:[#allocation5 + $0xc0] sm:$0xff]
    %v820 = vld [vmem:[#allocation5 + $0xc8] sm:$0xff]
    %v821 = vld [vmem:[#allocation5 + $0xd0] sm:$0xff]
    %v822 = vld [vmem:[#allocation5 + $0xd8] sm:$0xff]
    %v823 = vld [vmem:[#allocation5 + $0xe0] sm:$0xff]
    %v824 = vld [vmem:[#allocation5 + $0xe8] sm:$0xff]
    %v825 = vld [vmem:[#allocation5 + $0xf0] sm:$0xff]
    %v826 = vld [vmem:[#allocation5 + $0xf8] sm:$0xff]
    %v827 = vld [vmem:[#allocation5 + $0x100] sm:$0xff]
    %v828 = vld [vmem:[#allocation5 + $0x108] sm:$0xff]
    %v829 = vld [vmem:[#allocation5 + $0x110] sm:$0xff]
    %v830 = vld [vmem:[#allocation5 + $0x118] sm:$0xff]
    %v831 = vld [vmem:[#allocation5 + $0x120] sm:$0xff]
    %v832 = vld [vmem:[#allocation5 + $0x128] sm:$0xff]
    %v833 = vld [vmem:[#allocation5 + $0x130] sm:$0xff]
    %v834 = vld [vmem:[#allocation5 + $0x138] sm:$0xff]
    %v835 = vld [vmem:[#allocation5 + $0x140] sm:$0xff]
    %v836 = vld [vmem:[#allocation5 + $0x148] sm:$0xff]
    %v837 = vld [vmem:[#allocation5 + $0x150] sm:$0xff]
    %v838 = vld [vmem:[#allocation5 + $0x158] sm:$0xff]
    %v839 = vld [vmem:[#allocation5 + $0x160] sm:$0xff]
    %v840 = vld [vmem:[#allocation5 + $0x168] sm:$0xff]
    %v841 = vld [vmem:[#allocation5 + $0x170] sm:$0xff]
    %v842 = vld [vmem:[#allocation5 + $0x178] sm:$0xff]
    %v843 = vld [vmem:[#allocation5 + $0x180] sm:$0xff]
    %v844 = vld [vmem:[#allocation5 + $0x188] sm:$0xff]
    %v845 = vld [vmem:[#allocation5 + $0x190] sm:$0xff]
    %v846 = vld [vmem:[#allocation5 + $0x198] sm:$0xff]
    %v847 = vld [vmem:[#allocation5 + $0x1a0] sm:$0xff]
    %v848 = vld [vmem:[#allocation5 + $0x1a8] sm:$0xff]
    %v849 = vld [vmem:[#allocation5 + $0x1b0] sm:$0xff]
    %v850 = vld [vmem:[#allocation5 + $0x1b8] sm:$0xff]
    %v851 = vld [vmem:[#allocation5 + $0x1c0] sm:$0xff]
    %v852 = vld [vmem:[#allocation5 + $0x1c8] sm:$0xff]
    %v853 = vld [vmem:[#allocation5 + $0x1d0] sm:$0xff]
    %v854 = vld [vmem:[#allocation5 + $0x1d8] sm:$0xff]
    %v855 = vld [vmem:[#allocation5 + $0x1e0] sm:$0xff]
    %v856 = vld [vmem:[#allocation5 + $0x1e8] sm:$0xff]
    %v857 = vld [vmem:[#allocation5 + $0x1f0] sm:$0xff]
    %v858 = vld [vmem:[#allocation5 + $0x1f8] sm:$0xff]
    %v859 = vld [vmem:[#allocation5 + $0x200] sm:$0xff]
    %v860 = vld [vmem:[#allocation5 + $0x208] sm:$0xff]
    %v861 = vld [vmem:[#allocation5 + $0x210] sm:$0xff]
    %v862 = vld [vmem:[#allocation5 + $0x218] sm:$0xff]
    %v863 = vld [vmem:[#allocation5 + $0x220] sm:$0xff]
    %v864 = vld [vmem:[#allocation5 + $0x228] sm:$0xff]
    %v865 = vld [vmem:[#allocation5 + $0x230] sm:$0xff]
    %v866 = vld [vmem:[#allocation5 + $0x238] sm:$0xff]
    %v867 = vld [vmem:[#allocation5 + $0x240] sm:$0xff]
    %v868 = vld [vmem:[#allocation5 + $0x248] sm:$0xff]
    %v869 = vld [vmem:[#allocation5 + $0x250] sm:$0xff]
    %v870 = vld [vmem:[#allocation5 + $0x258] sm:$0xff]
    %v871 = vld [vmem:[#allocation5 + $0x260] sm:$0xff]
    %v872 = vld [vmem:[#allocation5 + $0x268] sm:$0xff]
    %v873 = vld [vmem:[#allocation5 + $0x270] sm:$0xff]
    %v874 = vld [vmem:[#allocation5 + $0x278] sm:$0xff]
    %v875 = vld [vmem:[#allocation5 + $0x280] sm:$0xff]
    %v876 = vld [vmem:[#allocation5 + $0x288] sm:$0xff]
    %v877 = vld [vmem:[#allocation5 + $0x290] sm:$0xff]
    %v878 = vld [vmem:[#allocation5 + $0x298] sm:$0xff]
    %v879 = vld [vmem:[#allocation5 + $0x2a0] sm:$0xff]
    %v880 = vld [vmem:[#allocation5 + $0x2a8] sm:$0xff]
    %v881 = vld [vmem:[#allocation5 + $0x2b0] sm:$0xff]
    %v882 = vld [vmem:[#allocation5 + $0x2b8] sm:$0xff]
    %v883 = vld [vmem:[#allocation5 + $0x2c0] sm:$0xff]
    %v884 = vld [vmem:[#allocation5 + $0x2c8] sm:$0xff]
    %v885 = vld [vmem:[#allocation5 + $0x2d0] sm:$0xff]
    %v886 = vld [vmem:[#allocation5 + $0x2d8] sm:$0xff]
    %v887 = vld [vmem:[#allocation5 + $0x2e0] sm:$0xff]
    %v888 = vld [vmem:[#allocation5 + $0x2e8] sm:$0xff]
    %v889 = vld [vmem:[#allocation5 + $0x2f0] sm:$0xff]
    %v890 = vld [vmem:[#allocation5 + $0x2f8] sm:$0xff]
    %v891 = vld [vmem:[#allocation5 + $0x300] sm:$0xff]
    %v892 = vld [vmem:[#allocation5 + $0x308] sm:$0xff]
    %v893 = vld [vmem:[#allocation5 + $0x310] sm:$0xff]
    %v894 = vld [vmem:[#allocation5 + $0x318] sm:$0xff]
    %v895 = vld [vmem:[#allocation5 + $0x320] sm:$0xff]
    %v896 = vld [vmem:[#allocation5 + $0x328] sm:$0xff]
    %v897 = vld [vmem:[#allocation5 + $0x330] sm:$0xff]
    %v898 = vld [vmem:[#allocation5 + $0x338] sm:$0xff]
    %v899 = vld [vmem:[#allocation5 + $0x340] sm:$0xff]
    %v900 = vld [vmem:[#allocation5 + $0x348] sm:$0xff]
    %v901 = vld [vmem:[#allocation5 + $0x350] sm:$0xff]
    %v902 = vld [vmem:[#allocation5 + $0x358] sm:$0xff]
    %v903 = vld [vmem:[#allocation5 + $0x360] sm:$0xff]
    %v904 = vld [vmem:[#allocation5 + $0x368] sm:$0xff]
    %v905 = vld [vmem:[#allocation5 + $0x370] sm:$0xff]
    %v906 = vld [vmem:[#allocation5 + $0x378] sm:$0xff]
    %v907 = vld [vmem:[#allocation5 + $0x380] sm:$0xff]
    %v908 = vld [vmem:[#allocation5 + $0x388] sm:$0xff]
    %v909 = vld [vmem:[#allocation5 + $0x390] sm:$0xff]
    %v910 = vld [vmem:[#allocation5 + $0x398] sm:$0xff]
    %v911 = vld [vmem:[#allocation5 + $0x3a0] sm:$0xff]
    %v912 = vld [vmem:[#allocation5 + $0x3a8] sm:$0xff]
    %v913 = vld [vmem:[#allocation5 + $0x3b0] sm:$0xff]
    %v914 = vld [vmem:[#allocation5 + $0x3b8] sm:$0xff]
    %v915 = vld [vmem:[#allocation5 + $0x3c0] sm:$0xff]
    %v916 = vld [vmem:[#allocation5 + $0x3c8] sm:$0xff]
    %v917 = vld [vmem:[#allocation5 + $0x3d0] sm:$0xff]
    %v918 = vld [vmem:[#allocation5 + $0x3d8] sm:$0xff]
    %v919 = vld [vmem:[#allocation5 + $0x3e0] sm:$0xff]
    %v920 = vld [vmem:[#allocation5 + $0x3e8] sm:$0xff]
    %v921 = vld [vmem:[#allocation5 + $0x3f0] sm:$0xff]
    %v922 = vld [vmem:[#allocation5 + $0x3f8] sm:$0xff]
    %v923 = vld [vmem:[#allocation5 + $0x400] sm:$0xff]
    %v924 = vld [vmem:[#allocation5 + $0x408] sm:$0xff]
    %v925 = vld [vmem:[#allocation5 + $0x410] sm:$0xff]
    %v926 = vld [vmem:[#allocation5 + $0x418] sm:$0xff]
    %v927 = vld [vmem:[#allocation5 + $0x420] sm:$0xff]
    %v928 = vld [vmem:[#allocation5 + $0x428] sm:$0xff]
    %v929 = vld [vmem:[#allocation5 + $0x430] sm:$0xff]
    %v930 = vld [vmem:[#allocation5 + $0x438] sm:$0xff]
    %v931 = vld [vmem:[#allocation5 + $0x440] sm:$0xff]
    %v932 = vld [vmem:[#allocation5 + $0x448] sm:$0xff]
    %v933 = vld [vmem:[#allocation5 + $0x450] sm:$0xff]
    %v934 = vld [vmem:[#allocation5 + $0x458] sm:$0xff]
    %v935 = vld [vmem:[#allocation5 + $0x460] sm:$0xff]
    %v936 = vld [vmem:[#allocation5 + $0x468] sm:$0xff]
    %v937 = vld [vmem:[#allocation5 + $0x470] sm:$0xff]
    %v938 = vld [vmem:[#allocation5 + $0x478] sm:$0xff]
    %v939 = vld [vmem:[#allocation5 + $0x480] sm:$0xff]
    %v940 = vld [vmem:[#allocation5 + $0x488] sm:$0xff]
    %v941 = vld [vmem:[#allocation5 + $0x490] sm:$0xff]
    %v942 = vld [vmem:[#allocation5 + $0x498] sm:$0xff]
    %v943 = vld [vmem:[#allocation5 + $0x4a0] sm:$0xff]
    %v944 = vld [vmem:[#allocation5 + $0x4a8] sm:$0xff]
    %v945 = vld [vmem:[#allocation5 + $0x4b0] sm:$0xff]
    %v946 = vld [vmem:[#allocation5 + $0x4b8] sm:$0xff]
    %v947 = vld [vmem:[#allocation5 + $0x4c0] sm:$0xff]
    %v948 = vld [vmem:[#allocation5 + $0x4c8] sm:$0xff]
    %v949 = vld [vmem:[#allocation5 + $0x4d0] sm:$0xff]
    %v950 = vld [vmem:[#allocation5 + $0x4d8] sm:$0xff]
    %v951 = vld [vmem:[#allocation5 + $0x4e0] sm:$0xff]
    %v952 = vld [vmem:[#allocation5 + $0x4e8] sm:$0xff]
    %v953 = vld [vmem:[#allocation5 + $0x4f0] sm:$0xff]
    %v954 = vld [vmem:[#allocation5 + $0x4f8] sm:$0xff]
    %v955 = vld [vmem:[#allocation5 + $0x500] sm:$0xff]
    %v956 = vld [vmem:[#allocation5 + $0x508] sm:$0xff]
    %v957 = vld [vmem:[#allocation5 + $0x510] sm:$0xff]
    %v958 = vld [vmem:[#allocation5 + $0x518] sm:$0xff]
    %v959 = vld [vmem:[#allocation5 + $0x520] sm:$0xff]
    %v960 = vld [vmem:[#allocation5 + $0x528] sm:$0xff]
    %v961 = vld [vmem:[#allocation5 + $0x530] sm:$0xff]
    %v962 = vld [vmem:[#allocation5 + $0x538] sm:$0xff]
    %v963 = vld [vmem:[#allocation5 + $0x540] sm:$0xff]
    %v964 = vld [vmem:[#allocation5 + $0x548] sm:$0xff]
    %v965 = vld [vmem:[#allocation5 + $0x550] sm:$0xff]
    %v966 = vld [vmem:[#allocation5 + $0x558] sm:$0xff]
    %v967 = vld [vmem:[#allocation5 + $0x560] sm:$0xff]
    %v968 = vld [vmem:[#allocation5 + $0x568] sm:$0xff]
    %v969 = vld [vmem:[#allocation5 + $0x570] sm:$0xff]
    %v970 = vld [vmem:[#allocation5 + $0x578] sm:$0xff]
    %v971 = vld [vmem:[#allocation5 + $0x580] sm:$0xff]
    %v972 = vld [vmem:[#allocation5 + $0x588] sm:$0xff]
    %v973 = vld [vmem:[#allocation5 + $0x590] sm:$0xff]
    %v974 = vld [vmem:[#allocation5 + $0x598] sm:$0xff]
    %v975 = vld [vmem:[#allocation5 + $0x5a0] sm:$0xff]
    %v976 = vld [vmem:[#allocation5 + $0x5a8] sm:$0xff]
    %v977 = vld [vmem:[#allocation5 + $0x5b0] sm:$0xff]
    %v978 = vld [vmem:[#allocation5 + $0x5b8] sm:$0xff]
    %v979 = vld [vmem:[#allocation5 + $0x5c0] sm:$0xff]
    %v980 = vld [vmem:[#allocation5 + $0x5c8] sm:$0xff]
    %v981 = vld [vmem:[#allocation5 + $0x5d0] sm:$0xff]
    %v982 = vld [vmem:[#allocation5 + $0x5d8] sm:$0xff]
    %v983 = vld [vmem:[#allocation5 + $0x5e0] sm:$0xff]
    %v984 = vld [vmem:[#allocation5 + $0x5e8] sm:$0xff]
    %v985 = vld [vmem:[#allocation5 + $0x5f0] sm:$0xff]
    %v986 = vld [vmem:[#allocation5 + $0x5f8] sm:$0xff]
    %v987 = vld [vmem:[#allocation5 + $0x600] sm:$0xff]
    %v988 = vld [vmem:[#allocation5 + $0x608] sm:$0xff]
    %v989 = vld [vmem:[#allocation5 + $0x610] sm:$0xff]
    %v990 = vld [vmem:[#allocation5 + $0x618] sm:$0xff]
    %v991 = vld [vmem:[#allocation5 + $0x620] sm:$0xff]
    %v992 = vld [vmem:[#allocation5 + $0x628] sm:$0xff]
    %v993 = vld [vmem:[#allocation5 + $0x630] sm:$0xff]
    %v994 = vld [vmem:[#allocation5 + $0x638] sm:$0xff]
    %v995 = vld [vmem:[#allocation5 + $0x640] sm:$0xff]
    %v996 = vld [vmem:[#allocation5 + $0x648] sm:$0xff]
    %v997 = vld [vmem:[#allocation5 + $0x650] sm:$0xff]
    %v998 = vld [vmem:[#allocation5 + $0x658] sm:$0xff]
    %v999 = vld [vmem:[#allocation5 + $0x660] sm:$0xff]
    %v1000 = vld [vmem:[#allocation5 + $0x668] sm:$0xff]
    %v1001 = vld [vmem:[#allocation5 + $0x670] sm:$0xff]
    %v1002 = vld [vmem:[#allocation5 + $0x678] sm:$0xff]
    %v1003 = vld [vmem:[#allocation5 + $0x680] sm:$0xff]
    %v1004 = vld [vmem:[#allocation5 + $0x688] sm:$0xff]
    %v1005 = vld [vmem:[#allocation5 + $0x690] sm:$0xff]
    %v1006 = vld [vmem:[#allocation5 + $0x698] sm:$0xff]
    %v1007 = vld [vmem:[#allocation5 + $0x6a0] sm:$0xff]
    %v1008 = vld [vmem:[#allocation5 + $0x6a8] sm:$0xff]
    %v1009 = vld [vmem:[#allocation5 + $0x6b0] sm:$0xff]
    %v1010 = vld [vmem:[#allocation5 + $0x6b8] sm:$0xff]
    %v1011 = vld [vmem:[#allocation5 + $0x6c0] sm:$0xff]
    %v1012 = vld [vmem:[#allocation5 + $0x6c8] sm:$0xff]
    %v1013 = vld [vmem:[#allocation5 + $0x6d0] sm:$0xff]
    %v1014 = vld [vmem:[#allocation5 + $0x6d8] sm:$0xff]
    %v1015 = vld [vmem:[#allocation5 + $0x6e0] sm:$0xff]
    %v1016 = vld [vmem:[#allocation5 + $0x6e8] sm:$0xff]
    %v1017 = vld [vmem:[#allocation5 + $0x6f0] sm:$0xff]
    %v1018 = vld [vmem:[#allocation5 + $0x6f8] sm:$0xff]
    %v1019 = vld [vmem:[#allocation5 + $0x700] sm:$0xff]
    %v1020 = vld [vmem:[#allocation5 + $0x708] sm:$0xff]
    %v1021 = vld [vmem:[#allocation5 + $0x710] sm:$0xff]
    %v1022 = vld [vmem:[#allocation5 + $0x718] sm:$0xff]
    %v1023 = vld [vmem:[#allocation5 + $0x720] sm:$0xff]
    %v1024 = vld [vmem:[#allocation5 + $0x728] sm:$0xff]
    %v1025 = vld [vmem:[#allocation5 + $0x730] sm:$0xff]
    %v1026 = vld [vmem:[#allocation5 + $0x738] sm:$0xff]
    %v1027 = vld [vmem:[#allocation5 + $0x740] sm:$0xff]
    %v1028 = vld [vmem:[#allocation5 + $0x748] sm:$0xff]
    %v1029 = vld [vmem:[#allocation5 + $0x750] sm:$0xff]
    %v1030 = vld [vmem:[#allocation5 + $0x758] sm:$0xff]
    %v1031 = vld [vmem:[#allocation5 + $0x760] sm:$0xff]
    %v1032 = vld [vmem:[#allocation5 + $0x768] sm:$0xff]
    %v1033 = vld [vmem:[#allocation5 + $0x770] sm:$0xff]
    %v1034 = vld [vmem:[#allocation5 + $0x778] sm:$0xff]
    %v1035 = vld [vmem:[#allocation5 + $0x780] sm:$0xff]
    %v1036 = vld [vmem:[#allocation5 + $0x788] sm:$0xff]
    %v1037 = vld [vmem:[#allocation5 + $0x790] sm:$0xff]
    %v1038 = vld [vmem:[#allocation5 + $0x798] sm:$0xff]
    %v1039 = vld [vmem:[#allocation5 + $0x7a0] sm:$0xff]
    %v1040 = vld [vmem:[#allocation5 + $0x7a8] sm:$0xff]
    %v1041 = vld [vmem:[#allocation5 + $0x7b0] sm:$0xff]
    %v1042 = vld [vmem:[#allocation5 + $0x7b8] sm:$0xff]
    %v1043 = vld [vmem:[#allocation5 + $0x7c0] sm:$0xff]
    %v1044 = vld [vmem:[#allocation5 + $0x7c8] sm:$0xff]
    %v1045 = vld [vmem:[#allocation5 + $0x7d0] sm:$0xff]
    %v1046 = vld [vmem:[#allocation5 + $0x7d8] sm:$0xff]
    %v1047 = vld [vmem:[#allocation5 + $0x7e0] sm:$0xff]
    %v1048 = vld [vmem:[#allocation5 + $0x7e8] sm:$0xff]
    %v1049 = vld [vmem:[#allocation5 + $0x7f0] sm:$0xff]
    %v1050 = vld [vmem:[#allocation5 + $0x7f8] sm:$0xff]
    %v1051 = vld [vmem:[%s6] sm:$0xf]
    %v1053 = vlaneseq
    %v1054 = vshrl.u32 %v1053, 7
    %v1055 = vsub.s32 0, %v1054
    %v1056 = vrot.slane %v1051, %v1055
    %v1057 = vlaneseq
    %v1058 = vshrl.u32 %v1057, 7
    %v1059 = vsub.s32 1, %v1058
    %v1060 = vrot.slane %v1051, %v1059
    %v1061 = vlaneseq
    %v1062 = vshrl.u32 %v1061, 7
    %v1063 = vsub.s32 2, %v1062
    %v1064 = vrot.slane %v1051, %v1063
    %v1065 = vlaneseq
    %v1066 = vshrl.u32 %v1065, 7
    %v1067 = vsub.s32 3, %v1066
    %v1068 = vrot.slane %v1051, %v1067
    %1073 = vmatprep.subr.mxu0 %v796
    %1074 = vmatpush1.msra.mxu0 %v795
    %1075 = vmatprep.subr.mxu0 %v800
    %1076 = vmatpush1.msra.mxu0 %v799
    %1077 = vmatprep.subr.mxu0 %v804
    %1078 = vmatpush1.msra.mxu0 %v803
    %1079 = vmatprep.subr.mxu0 %v808
    %1080 = vmatpush1.msra.mxu0 %v807
    %1081 = vmatprep.subr.mxu0 %v812
    %1082 = vmatpush1.msra.mxu0 %v811
    %1083 = vmatprep.subr.mxu0 %v816
    %1084 = vmatpush1.msra.mxu0 %v815
    %1085 = vmatprep.subr.mxu0 %v820
    %1086 = vmatpush1.msra.mxu0 %v819
    %1087 = vmatprep.subr.mxu0 %v824
    %1088 = vmatpush1.msra.mxu0 %v823
    %1089 = vmatprep.subr.mxu0 %v828
    %1090 = vmatpush1.msra.mxu0 %v827
    %1091 = vmatprep.subr.mxu0 %v832
    %1092 = vmatpush1.msra.mxu0 %v831
    %1093 = vmatprep.subr.mxu0 %v836
    %1094 = vmatpush1.msra.mxu0 %v835
    %1095 = vmatprep.subr.mxu0 %v840
    %1096 = vmatpush1.msra.mxu0 %v839
    %1097 = vmatprep.subr.mxu0 %v844
    %1098 = vmatpush1.msra.mxu0 %v843
    %1099 = vmatprep.subr.mxu0 %v848
    %1100 = vmatpush1.msra.mxu0 %v847
    %1101 = vmatprep.subr.mxu0 %v852
    %1102 = vmatpush1.msra.mxu0 %v851
    %1103 = vmatprep.subr.mxu0 %v856
    %1104 = vmatpush1.msra.mxu0 %v855
    %1105 = vmatprep.subr.mxu0 %v860
    %1106 = vmatpush1.msra.mxu0 %v859
    %1107 = vmatprep.subr.mxu0 %v864
    %1108 = vmatpush1.msra.mxu0 %v863
    %1109 = vmatprep.subr.mxu0 %v868
    %1110 = vmatpush1.msra.mxu0 %v867
    %1111 = vmatprep.subr.mxu0 %v872
    %1112 = vmatpush1.msra.mxu0 %v871
    %1113 = vmatprep.subr.mxu0 %v876
    %1114 = vmatpush1.msra.mxu0 %v875
    %1115 = vmatprep.subr.mxu0 %v880
    %1116 = vmatpush1.msra.mxu0 %v879
    %1117 = vmatprep.subr.mxu0 %v884
    %1118 = vmatpush1.msra.mxu0 %v883
    %1119 = vmatprep.subr.mxu0 %v888
    %1120 = vmatpush1.msra.mxu0 %v887
    %1121 = vmatprep.subr.mxu0 %v892
    %1122 = vmatpush1.msra.mxu0 %v891
    %1123 = vmatprep.subr.mxu0 %v896
    %1124 = vmatpush1.msra.mxu0 %v895
    %1125 = vmatprep.subr.mxu0 %v900
    %1126 = vmatpush1.msra.mxu0 %v899
    %1127 = vmatprep.subr.mxu0 %v904
    %1128 = vmatpush1.msra.mxu0 %v903
    %1129 = vmatprep.subr.mxu0 %v908
    %1130 = vmatpush1.msra.mxu0 %v907
    %1131 = vmatprep.subr.mxu0 %v912
    %1132 = vmatpush1.msra.mxu0 %v911
    %1133 = vmatprep.subr.mxu0 %v916
    %1134 = vmatpush1.msra.mxu0 %v915
    %1135 = vmatprep.subr.mxu0 %v920
    %1136 = vmatpush1.msra.mxu0 %v919
    %1137 = vmatprep.mubr.f32.mxu0 %v788
    %1138 = vmatmul.mubr.f32.gmra.mrb[0].mxu0 %v787
    %v1139 = vpop.f32.mrb[0].mxu0
    %v1140 = vadd.f32 %v1056, %v1139
    %v1141 = vpop.f32.mrb[0].mxu0
    %v1142 = vadd.f32 %v1060, %v1141
    %1143 = vmatprep.mubr.f32.mxu0 %v792
    %1144 = vmatmul.mubr.f32.gmra.mrb[0].mxu0 %v791
    %v1145 = vpop.f32.mrb[0].mxu0
    %v1146 = vadd.f32 %v1056, %v1145
    %v1147 = vpop.f32.mrb[0].mxu0
    %v1148 = vadd.f32 %v1060, %v1147
    %1149 = vdwg.mxu0
    %1150 = vmatprep.subr.mxu0 %v924
    %1151 = vmatpush1.msra.mxu0 %v923
    %1152 = vmatprep.subr.mxu0 %v928
    %1153 = vmatpush1.msra.mxu0 %v927
    %1154 = vmatprep.subr.mxu0 %v932
    %1155 = vmatpush1.msra.mxu0 %v931
    %1156 = vmatprep.subr.mxu0 %v936
    %1157 = vmatpush1.msra.mxu0 %v935
    %1158 = vmatprep.subr.mxu0 %v940
    %1159 = vmatpush1.msra.mxu0 %v939
    %1160 = vmatprep.subr.mxu0 %v944
    %1161 = vmatpush1.msra.mxu0 %v943
    %1162 = vmatprep.subr.mxu0 %v948
    %1163 = vmatpush1.msra.mxu0 %v947
    %1164 = vmatprep.subr.mxu0 %v952
    %1165 = vmatpush1.msra.mxu0 %v951
    %1166 = vmatprep.subr.mxu0 %v956
    %1167 = vmatpush1.msra.mxu0 %v955
    %1168 = vmatprep.subr.mxu0 %v960
    %1169 = vmatpush1.msra.mxu0 %v959
    %1170 = vmatprep.subr.mxu0 %v964
    %1171 = vmatpush1.msra.mxu0 %v963
    %1172 = vmatprep.subr.mxu0 %v968
    %1173 = vmatpush1.msra.mxu0 %v967
    %1174 = vmatprep.subr.mxu0 %v972
    %1175 = vmatpush1.msra.mxu0 %v971
    %1176 = vmatprep.subr.mxu0 %v976
    %1177 = vmatpush1.msra.mxu0 %v975
    %1178 = vmatprep.subr.mxu0 %v980
    %1179 = vmatpush1.msra.mxu0 %v979
    %1180 = vmatprep.subr.mxu0 %v984
    %1181 = vmatpush1.msra.mxu0 %v983
    %1182 = vmatprep.subr.mxu0 %v988
    %1183 = vmatpush1.msra.mxu0 %v987
    %1184 = vmatprep.subr.mxu0 %v992
    %1185 = vmatpush1.msra.mxu0 %v991
    %1186 = vmatprep.subr.mxu0 %v996
    %1187 = vmatpush1.msra.mxu0 %v995
    %1188 = vmatprep.subr.mxu0 %v1000
    %1189 = vmatpush1.msra.mxu0 %v999
    %1190 = vmatprep.subr.mxu0 %v1004
    %1191 = vmatpush1.msra.mxu0 %v1003
    %1192 = vmatprep.subr.mxu0 %v1008
    %1193 = vmatpush1.msra.mxu0 %v1007
    %1194 = vmatprep.subr.mxu0 %v1012
    %1195 = vmatpush1.msra.mxu0 %v1011
    %1196 = vmatprep.subr.mxu0 %v1016
    %1197 = vmatpush1.msra.mxu0 %v1015
    %1198 = vmatprep.subr.mxu0 %v1020
    %1199 = vmatpush1.msra.mxu0 %v1019
    %1200 = vmatprep.subr.mxu0 %v1024
    %1201 = vmatpush1.msra.mxu0 %v1023
    %1202 = vmatprep.subr.mxu0 %v1028
    %1203 = vmatpush1.msra.mxu0 %v1027
    %1204 = vmatprep.subr.mxu0 %v1032
    %1205 = vmatpush1.msra.mxu0 %v1031
    %1206 = vmatprep.subr.mxu0 %v1036
    %1207 = vmatpush1.msra.mxu0 %v1035
    %1208 = vmatprep.subr.mxu0 %v1040
    %1209 = vmatpush1.msra.mxu0 %v1039
    %1210 = vmatprep.subr.mxu0 %v1044
    %1211 = vmatpush1.msra.mxu0 %v1043
    %1212 = vmatprep.subr.mxu0 %v1048
    %1213 = vmatpush1.msra.mxu0 %v1047
    %1214 = vmatprep.mubr.f32.mxu0 %v790
    %1215 = vmatmul.mubr.f32.gmra.mrb[0].mxu0 %v789
    %v1216 = vpop.f32.mrb[0].mxu0
    %v1217 = vadd.f32 %v1140, %v1216
    %v1218 = vpop.f32.mrb[0].mxu0
    %v1219 = vadd.f32 %v1142, %v1218
    %1220 = vmatprep.mubr.f32.mxu0 %v794
    %1221 = vmatmul.mubr.f32.gmra.mrb[0].mxu0 %v793
    %v1222 = vpop.f32.mrb[0].mxu0
    %v1223 = vadd.f32 %v1146, %v1222
    %v1224 = vpop.f32.mrb[0].mxu0
    %v1225 = vadd.f32 %v1148, %v1224
    %1226 = vdwg.mxu0
    %1227 = vmatprep.subr.mxu0 %v798
    %1228 = vmatpush1.msra.mxu0 %v797
    %1229 = vmatprep.subr.mxu0 %v802
    %1230 = vmatpush1.msra.mxu0 %v801
    %1231 = vmatprep.subr.mxu0 %v806
    %1232 = vmatpush1.msra.mxu0 %v805
    %1233 = vmatprep.subr.mxu0 %v810
    %1234 = vmatpush1.msra.mxu0 %v809
    %1235 = vmatprep.subr.mxu0 %v814
    %1236 = vmatpush1.msra.mxu0 %v813
    %1237 = vmatprep.subr.mxu0 %v818
    %1238 = vmatpush1.msra.mxu0 %v817
    %1239 = vmatprep.subr.mxu0 %v822
    %1240 = vmatpush1.msra.mxu0 %v821
    %1241 = vmatprep.subr.mxu0 %v826
    %1242 = vmatpush1.msra.mxu0 %v825
    %1243 = vmatprep.subr.mxu0 %v830
    %1244 = vmatpush1.msra.mxu0 %v829
    %1245 = vmatprep.subr.mxu0 %v834
    %1246 = vmatpush1.msra.mxu0 %v833
    %1247 = vmatprep.subr.mxu0 %v838
    %1248 = vmatpush1.msra.mxu0 %v837
    %1249 = vmatprep.subr.mxu0 %v842
    %1250 = vmatpush1.msra.mxu0 %v841
    %1251 = vmatprep.subr.mxu0 %v846
    %1252 = vmatpush1.msra.mxu0 %v845
    %1253 = vmatprep.subr.mxu0 %v850
    %1254 = vmatpush1.msra.mxu0 %v849
    %1255 = vmatprep.subr.mxu0 %v854
    %1256 = vmatpush1.msra.mxu0 %v853
    %1257 = vmatprep.subr.mxu0 %v858
    %1258 = vmatpush1.msra.mxu0 %v857
    %1259 = vmatprep.subr.mxu0 %v862
    %1260 = vmatpush1.msra.mxu0 %v861
    %1261 = vmatprep.subr.mxu0 %v866
    %1262 = vmatpush1.msra.mxu0 %v865
    %1263 = vmatprep.subr.mxu0 %v870
    %1264 = vmatpush1.msra.mxu0 %v869
    %1265 = vmatprep.subr.mxu0 %v874
    %1266 = vmatpush1.msra.mxu0 %v873
    %1267 = vmatprep.subr.mxu0 %v878
    %1268 = vmatpush1.msra.mxu0 %v877
    %1269 = vmatprep.subr.mxu0 %v882
    %1270 = vmatpush1.msra.mxu0 %v881
    %1271 = vmatprep.subr.mxu0 %v886
    %1272 = vmatpush1.msra.mxu0 %v885
    %1273 = vmatprep.subr.mxu0 %v890
    %1274 = vmatpush1.msra.mxu0 %v889
    %1275 = vmatprep.subr.mxu0 %v894
    %1276 = vmatpush1.msra.mxu0 %v893
    %1277 = vmatprep.subr.mxu0 %v898
    %1278 = vmatpush1.msra.mxu0 %v897
    %1279 = vmatprep.subr.mxu0 %v902
    %1280 = vmatpush1.msra.mxu0 %v901
    %1281 = vmatprep.subr.mxu0 %v906
    %1282 = vmatpush1.msra.mxu0 %v905
    %1283 = vmatprep.subr.mxu0 %v910
    %1284 = vmatpush1.msra.mxu0 %v909
    %1285 = vmatprep.subr.mxu0 %v914
    %1286 = vmatpush1.msra.mxu0 %v913
    %1287 = vmatprep.subr.mxu0 %v918
    %1288 = vmatpush1.msra.mxu0 %v917
    %1289 = vmatprep.subr.mxu0 %v922
    %1290 = vmatpush1.msra.mxu0 %v921
    %1291 = vmatprep.mubr.f32.mxu0 %v788
    %1292 = vmatmul.mubr.f32.gmra.mrb[0].mxu0 %v787
    %v1293 = vpop.f32.mrb[0].mxu0
    %v1294 = vadd.f32 %v1064, %v1293
    %v1295 = vpop.f32.mrb[0].mxu0
    %v1296 = vadd.f32 %v1068, %v1295
    %1297 = vmatprep.mubr.f32.mxu0 %v792
    %1298 = vmatmul.mubr.f32.gmra.mrb[0].mxu0 %v791
    %v1299 = vpop.f32.mrb[0].mxu0
    %v1300 = vadd.f32 %v1064, %v1299
    %v1301 = vpop.f32.mrb[0].mxu0
    %v1302 = vadd.f32 %v1068, %v1301
    %1303 = vdwg.mxu0
    %1304 = vmatprep.subr.mxu0 %v926
    %1305 = vmatpush1.msra.mxu0 %v925
    %1306 = vmatprep.subr.mxu0 %v930
    %1307 = vmatpush1.msra.mxu0 %v929
    %1308 = vmatprep.subr.mxu0 %v934
    %1309 = vmatpush1.msra.mxu0 %v933
    %1310 = vmatprep.subr.mxu0 %v938
    %1311 = vmatpush1.msra.mxu0 %v937
    %1312 = vmatprep.subr.mxu0 %v942
    %1313 = vmatpush1.msra.mxu0 %v941
    %1314 = vmatprep.subr.mxu0 %v946
    %1315 = vmatpush1.msra.mxu0 %v945
    %1316 = vmatprep.subr.mxu0 %v950
    %1317 = vmatpush1.msra.mxu0 %v949
    %1318 = vmatprep.subr.mxu0 %v954
    %1319 = vmatpush1.msra.mxu0 %v953
    %1320 = vmatprep.subr.mxu0 %v958
    %1321 = vmatpush1.msra.mxu0 %v957
    %1322 = vmatprep.subr.mxu0 %v962
    %1323 = vmatpush1.msra.mxu0 %v961
    %1324 = vmatprep.subr.mxu0 %v966
    %1325 = vmatpush1.msra.mxu0 %v965
    %1326 = vmatprep.subr.mxu0 %v970
    %1327 = vmatpush1.msra.mxu0 %v969
    %1328 = vmatprep.subr.mxu0 %v974
    %1329 = vmatpush1.msra.mxu0 %v973
    %1330 = vmatprep.subr.mxu0 %v978
    %1331 = vmatpush1.msra.mxu0 %v977
    %1332 = vmatprep.subr.mxu0 %v982
    %1333 = vmatpush1.msra.mxu0 %v981
    %1334 = vmatprep.subr.mxu0 %v986
    %1335 = vmatpush1.msra.mxu0 %v985
    %1336 = vmatprep.subr.mxu0 %v990
    %1337 = vmatpush1.msra.mxu0 %v989
    %1338 = vmatprep.subr.mxu0 %v994
    %1339 = vmatpush1.msra.mxu0 %v993
    %1340 = vmatprep.subr.mxu0 %v998
    %1341 = vmatpush1.msra.mxu0 %v997
    %1342 = vmatprep.subr.mxu0 %v1002
    %1343 = vmatpush1.msra.mxu0 %v1001
    %1344 = vmatprep.subr.mxu0 %v1006
    %1345 = vmatpush1.msra.mxu0 %v1005
    %1346 = vmatprep.subr.mxu0 %v1010
    %1347 = vmatpush1.msra.mxu0 %v1009
    %1348 = vmatprep.subr.mxu0 %v1014
    %1349 = vmatpush1.msra.mxu0 %v1013
    %1350 = vmatprep.subr.mxu0 %v1018
    %1351 = vmatpush1.msra.mxu0 %v1017
    %1352 = vmatprep.subr.mxu0 %v1022
    %1353 = vmatpush1.msra.mxu0 %v1021
    %1354 = vmatprep.subr.mxu0 %v1026
    %1355 = vmatpush1.msra.mxu0 %v1025
    %1356 = vmatprep.subr.mxu0 %v1030
    %1357 = vmatpush1.msra.mxu0 %v1029
    %1358 = vmatprep.subr.mxu0 %v1034
    %1359 = vmatpush1.msra.mxu0 %v1033
    %1360 = vmatprep.subr.mxu0 %v1038
    %1361 = vmatpush1.msra.mxu0 %v1037
    %1362 = vmatprep.subr.mxu0 %v1042
    %1363 = vmatpush1.msra.mxu0 %v1041
    %1364 = vmatprep.subr.mxu0 %v1046
    %1365 = vmatpush1.msra.mxu0 %v1045
    %1366 = vmatprep.subr.mxu0 %v1050
    %1367 = vmatpush1.msra.mxu0 %v1049
    %1368 = vmatprep.mubr.f32.mxu0 %v790
    %1369 = vmatmul.mubr.f32.gmra.mrb[0].mxu0 %v789
    %v1370 = vpop.f32.mrb[0].mxu0
    %v1371 = vadd.f32 %v1294, %v1370
    %v1372 = vpop.f32.mrb[0].mxu0
    %v1373 = vadd.f32 %v1296, %v1372
    %1374 = vmatprep.mubr.f32.mxu0 %v794
    %1375 = vmatmul.mubr.f32.gmra.mrb[0].mxu0 %v793
    %v1376 = vpop.f32.mrb[0].mxu0
    %v1377 = vadd.f32 %v1300, %v1376
    %v1378 = vpop.f32.mrb[0].mxu0
    %v1379 = vadd.f32 %v1302, %v1378
    %1380 = vdwg.mxu0
    %v1381 = vmax.f32 %v1217, 0.0
    %v1382 = vmax.f32 %v1219, 0.0
    %v1383 = vmax.f32 %v1371, 0.0
    %v1384 = vmax.f32 %v1373, 0.0
    %v1385 = vmax.f32 %v1223, 0.0
    %v1386 = vmax.f32 %v1225, 0.0
    %v1387 = vmax.f32 %v1377, 0.0
    %v1388 = vmax.f32 %v1379, 0.0
    %v1389 = vld [vmem:[#allocation7] sm:$0xff]
    %v1390 = vld [vmem:[#allocation7 + $0x8] sm:$0xff]
    %v1391 = vld [vmem:[#allocation7 + $0x10] sm:$0xff]
    %v1392 = vld [vmem:[#allocation7 + $0x18] sm:$0xff]
    %v1393 = vld [vmem:[#allocation7 + $0x20] sm:$0xff]
    %v1394 = vld [vmem:[#allocation7 + $0x28] sm:$0xff]
    %v1395 = vld [vmem:[#allocation7 + $0x30] sm:$0xff]
    %v1396 = vld [vmem:[#allocation7 + $0x38] sm:$0xff]
    %v1397 = vld [vmem:[#allocation7 + $0x40] sm:$0xff]
    %v1398 = vld [vmem:[#allocation7 + $0x48] sm:$0xff]
    %v1399 = vld [vmem:[#allocation7 + $0x50] sm:$0xff]
    %v1400 = vld [vmem:[#allocation7 + $0x58] sm:$0xff]
    %v1401 = vld [vmem:[#allocation7 + $0x60] sm:$0xff]
    %v1402 = vld [vmem:[#allocation7 + $0x68] sm:$0xff]
    %v1403 = vld [vmem:[#allocation7 + $0x70] sm:$0xff]
    %v1404 = vld [vmem:[#allocation7 + $0x78] sm:$0xff]
    %v1405 = vld [vmem:[#allocation7 + $0x80] sm:$0xff]
    %v1406 = vld [vmem:[#allocation7 + $0x88] sm:$0xff]
    %v1407 = vld [vmem:[#allocation7 + $0x90] sm:$0xff]
    %v1408 = vld [vmem:[#allocation7 + $0x98] sm:$0xff]
    %v1409 = vld [vmem:[#allocation7 + $0xa0] sm:$0xff]
    %v1410 = vld [vmem:[#allocation7 + $0xa8] sm:$0xff]
    %v1411 = vld [vmem:[#allocation7 + $0xb0] sm:$0xff]
    %v1412 = vld [vmem:[#allocation7 + $0xb8] sm:$0xff]
    %v1413 = vld [vmem:[#allocation7 + $0xc0] sm:$0xff]
    %v1414 = vld [vmem:[#allocation7 + $0xc8] sm:$0xff]
    %v1415 = vld [vmem:[#allocation7 + $0xd0] sm:$0xff]
    %v1416 = vld [vmem:[#allocation7 + $0xd8] sm:$0xff]
    %v1417 = vld [vmem:[#allocation7 + $0xe0] sm:$0xff]
    %v1418 = vld [vmem:[#allocation7 + $0xe8] sm:$0xff]
    %v1419 = vld [vmem:[#allocation7 + $0xf0] sm:$0xff]
    %v1420 = vld [vmem:[#allocation7 + $0xf8] sm:$0xff]
    %v1421 = vld [vmem:[#allocation7 + $0x100] sm:$0xff]
    %v1422 = vld [vmem:[#allocation7 + $0x108] sm:$0xff]
    %v1423 = vld [vmem:[#allocation7 + $0x110] sm:$0xff]
    %v1424 = vld [vmem:[#allocation7 + $0x118] sm:$0xff]
    %v1425 = vld [vmem:[#allocation7 + $0x120] sm:$0xff]
    %v1426 = vld [vmem:[#allocation7 + $0x128] sm:$0xff]
    %v1427 = vld [vmem:[#allocation7 + $0x130] sm:$0xff]
    %v1428 = vld [vmem:[#allocation7 + $0x138] sm:$0xff]
    %v1429 = vld [vmem:[#allocation7 + $0x140] sm:$0xff]
    %v1430 = vld [vmem:[#allocation7 + $0x148] sm:$0xff]
    %v1431 = vld [vmem:[#allocation7 + $0x150] sm:$0xff]
    %v1432 = vld [vmem:[#allocation7 + $0x158] sm:$0xff]
    %v1433 = vld [vmem:[#allocation7 + $0x160] sm:$0xff]
    %v1434 = vld [vmem:[#allocation7 + $0x168] sm:$0xff]
    %v1435 = vld [vmem:[#allocation7 + $0x170] sm:$0xff]
    %v1436 = vld [vmem:[#allocation7 + $0x178] sm:$0xff]
    %v1437 = vld [vmem:[#allocation7 + $0x180] sm:$0xff]
    %v1438 = vld [vmem:[#allocation7 + $0x188] sm:$0xff]
    %v1439 = vld [vmem:[#allocation7 + $0x190] sm:$0xff]
    %v1440 = vld [vmem:[#allocation7 + $0x198] sm:$0xff]
    %v1441 = vld [vmem:[#allocation7 + $0x1a0] sm:$0xff]
    %v1442 = vld [vmem:[#allocation7 + $0x1a8] sm:$0xff]
    %v1443 = vld [vmem:[#allocation7 + $0x1b0] sm:$0xff]
    %v1444 = vld [vmem:[#allocation7 + $0x1b8] sm:$0xff]
    %v1445 = vld [vmem:[#allocation7 + $0x1c0] sm:$0xff]
    %v1446 = vld [vmem:[#allocation7 + $0x1c8] sm:$0xff]
    %v1447 = vld [vmem:[#allocation7 + $0x1d0] sm:$0xff]
    %v1448 = vld [vmem:[#allocation7 + $0x1d8] sm:$0xff]
    %v1449 = vld [vmem:[#allocation7 + $0x1e0] sm:$0xff]
    %v1450 = vld [vmem:[#allocation7 + $0x1e8] sm:$0xff]
    %v1451 = vld [vmem:[#allocation7 + $0x1f0] sm:$0xff]
    %v1452 = vld [vmem:[#allocation7 + $0x1f8] sm:$0xff]
    %v1453 = vld [vmem:[%s8] sm:$0x1]
    %v1455 = vlaneseq
    %v1456 = vshrl.u32 %v1455, 7
    %v1457 = vsub.s32 0, %v1456
    %v1458 = vrot.slane %v1453, %v1457
    %1460 = vmatprep.subr.mxu0 0.0
    %1461 = vmatpush1.msra.mxu0 %v1389
    %1462 = vmatprep.subr.mxu0 0.0
    %1463 = vmatpush1.msra.mxu0 %v1390
    %1464 = vmatprep.subr.mxu0 0.0
    %1465 = vmatpush1.msra.mxu0 %v1391
    %1466 = vmatprep.subr.mxu0 0.0
    %1467 = vmatpush1.msra.mxu0 %v1392
    %1468 = vmatprep.subr.mxu0 0.0
    %1469 = vmatpush1.msra.mxu0 %v1393
    %1470 = vmatprep.subr.mxu0 0.0
    %1471 = vmatpush1.msra.mxu0 %v1394
    %1472 = vmatprep.subr.mxu0 0.0
    %1473 = vmatpush1.msra.mxu0 %v1395
    %1474 = vmatprep.subr.mxu0 0.0
    %1475 = vmatpush1.msra.mxu0 %v1396
    %1476 = vmatprep.subr.mxu0 0.0
    %1477 = vmatpush1.msra.mxu0 %v1397
    %1478 = vmatprep.subr.mxu0 0.0
    %1479 = vmatpush1.msra.mxu0 %v1398
    %1480 = vmatprep.subr.mxu0 0.0
    %1481 = vmatpush1.msra.mxu0 %v1399
    %1482 = vmatprep.subr.mxu0 0.0
    %1483 = vmatpush1.msra.mxu0 %v1400
    %1484 = vmatprep.subr.mxu0 0.0
    %1485 = vmatpush1.msra.mxu0 %v1401
    %1486 = vmatprep.subr.mxu0 0.0
    %1487 = vmatpush1.msra.mxu0 %v1402
    %1488 = vmatprep.subr.mxu0 0.0
    %1489 = vmatpush1.msra.mxu0 %v1403
    %1490 = vmatprep.subr.mxu0 0.0
    %1491 = vmatpush1.msra.mxu0 %v1404
    %1492 = vmatprep.subr.mxu0 0.0
    %1493 = vmatpush1.msra.mxu0 %v1405
    %1494 = vmatprep.subr.mxu0 0.0
    %1495 = vmatpush1.msra.mxu0 %v1406
    %1496 = vmatprep.subr.mxu0 0.0
    %1497 = vmatpush1.msra.mxu0 %v1407
    %1498 = vmatprep.subr.mxu0 0.0
    %1499 = vmatpush1.msra.mxu0 %v1408
    %1500 = vmatprep.subr.mxu0 0.0
    %1501 = vmatpush1.msra.mxu0 %v1409
    %1502 = vmatprep.subr.mxu0 0.0
    %1503 = vmatpush1.msra.mxu0 %v1410
    %1504 = vmatprep.subr.mxu0 0.0
    %1505 = vmatpush1.msra.mxu0 %v1411
    %1506 = vmatprep.subr.mxu0 0.0
    %1507 = vmatpush1.msra.mxu0 %v1412
    %1508 = vmatprep.subr.mxu0 0.0
    %1509 = vmatpush1.msra.mxu0 %v1413
    %1510 = vmatprep.subr.mxu0 0.0
    %1511 = vmatpush1.msra.mxu0 %v1414
    %1512 = vmatprep.subr.mxu0 0.0
    %1513 = vmatpush1.msra.mxu0 %v1415
    %1514 = vmatprep.subr.mxu0 0.0
    %1515 = vmatpush1.msra.mxu0 %v1416
    %1516 = vmatprep.subr.mxu0 0.0
    %1517 = vmatpush1.msra.mxu0 %v1417
    %1518 = vmatprep.subr.mxu0 0.0
    %1519 = vmatpush1.msra.mxu0 %v1418
    %1520 = vmatprep.subr.mxu0 0.0
    %1521 = vmatpush1.msra.mxu0 %v1419
    %1522 = vmatprep.subr.mxu0 0.0
    %1523 = vmatpush1.msra.mxu0 %v1420
    %1524 = vmatprep.mubr.f32.mxu0 %v1382
    %1525 = vmatmul.mubr.f32.gmra.mrb[0].mxu0 %v1381
    %v1526 = vpop.f32.mrb[0].mxu0
    %v1527 = vadd.f32 %v1458, %v1526
    %v1528 = vpop.f32.mrb[0].mxu0
    %1529 = vmatprep.mubr.f32.mxu0 %v1386
    %1530 = vmatmul.mubr.f32.gmra.mrb[0].mxu0 %v1385
    %v1531 = vpop.f32.mrb[0].mxu0
    %v1532 = vadd.f32 %v1458, %v1531
    %v1533 = vpop.f32.mrb[0].mxu0
    %1534 = vdwg.mxu0
    %1535 = vmatprep.subr.mxu0 0.0
    %1536 = vmatpush1.msra.mxu0 %v1421
    %1537 = vmatprep.subr.mxu0 0.0
    %1538 = vmatpush1.msra.mxu0 %v1422
    %1539 = vmatprep.subr.mxu0 0.0
    %1540 = vmatpush1.msra.mxu0 %v1423
    %1541 = vmatprep.subr.mxu0 0.0
    %1542 = vmatpush1.msra.mxu0 %v1424
    %1543 = vmatprep.subr.mxu0 0.0
    %1544 = vmatpush1.msra.mxu0 %v1425
    %1545 = vmatprep.subr.mxu0 0.0
    %1546 = vmatpush1.msra.mxu0 %v1426
    %1547 = vmatprep.subr.mxu0 0.0
    %1548 = vmatpush1.msra.mxu0 %v1427
    %1549 = vmatprep.subr.mxu0 0.0
    %1550 = vmatpush1.msra.mxu0 %v1428
    %1551 = vmatprep.subr.mxu0 0.0
    %1552 = vmatpush1.msra.mxu0 %v1429
    %1553 = vmatprep.subr.mxu0 0.0
    %1554 = vmatpush1.msra.mxu0 %v1430
    %1555 = vmatprep.subr.mxu0 0.0
    %1556 = vmatpush1.msra.mxu0 %v1431
    %1557 = vmatprep.subr.mxu0 0.0
    %1558 = vmatpush1.msra.mxu0 %v1432
    %1559 = vmatprep.subr.mxu0 0.0
    %1560 = vmatpush1.msra.mxu0 %v1433
    %1561 = vmatprep.subr.mxu0 0.0
    %1562 = vmatpush1.msra.mxu0 %v1434
    %1563 = vmatprep.subr.mxu0 0.0
    %1564 = vmatpush1.msra.mxu0 %v1435
    %1565 = vmatprep.subr.mxu0 0.0
    %1566 = vmatpush1.msra.mxu0 %v1436
    %1567 = vmatprep.subr.mxu0 0.0
    %1568 = vmatpush1.msra.mxu0 %v1437
    %1569 = vmatprep.subr.mxu0 0.0
    %1570 = vmatpush1.msra.mxu0 %v1438
    %1571 = vmatprep.subr.mxu0 0.0
    %1572 = vmatpush1.msra.mxu0 %v1439
    %1573 = vmatprep.subr.mxu0 0.0
    %1574 = vmatpush1.msra.mxu0 %v1440
    %1575 = vmatprep.subr.mxu0 0.0
    %1576 = vmatpush1.msra.mxu0 %v1441
    %1577 = vmatprep.subr.mxu0 0.0
    %1578 = vmatpush1.msra.mxu0 %v1442
    %1579 = vmatprep.subr.mxu0 0.0
    %1580 = vmatpush1.msra.mxu0 %v1443
    %1581 = vmatprep.subr.mxu0 0.0
    %1582 = vmatpush1.msra.mxu0 %v1444
    %1583 = vmatprep.subr.mxu0 0.0
    %1584 = vmatpush1.msra.mxu0 %v1445
    %1585 = vmatprep.subr.mxu0 0.0
    %1586 = vmatpush1.msra.mxu0 %v1446
    %1587 = vmatprep.subr.mxu0 0.0
    %1588 = vmatpush1.msra.mxu0 %v1447
    %1589 = vmatprep.subr.mxu0 0.0
    %1590 = vmatpush1.msra.mxu0 %v1448
    %1591 = vmatprep.subr.mxu0 0.0
    %1592 = vmatpush1.msra.mxu0 %v1449
    %1593 = vmatprep.subr.mxu0 0.0
    %1594 = vmatpush1.msra.mxu0 %v1450
    %1595 = vmatprep.subr.mxu0 0.0
    %1596 = vmatpush1.msra.mxu0 %v1451
    %1597 = vmatprep.subr.mxu0 0.0
    %1598 = vmatpush1.msra.mxu0 %v1452
    %1599 = vmatprep.mubr.f32.mxu0 %v1384
    %1600 = vmatmul.mubr.f32.gmra.mrb[0].mxu0 %v1383
    %v1601 = vpop.f32.mrb[0].mxu0
    %v1602 = vadd.f32 %v1527, %v1601
    %v1603 = vpop.f32.mrb[0].mxu0
    %1604 = vmatprep.mubr.f32.mxu0 %v1388
    %1605 = vmatmul.mubr.f32.gmra.mrb[0].mxu0 %v1387
    %v1606 = vpop.f32.mrb[0].mxu0
    %v1607 = vadd.f32 %v1532, %v1606
    %v1608 = vpop.f32.mrb[0].mxu0
    %1609 = vdwg.mxu0
    %1610 = vst [vmem:[#allocation8] sm:$0xff] %v1602
    %1611 = vst [vmem:[#allocation8 + $0x8] sm:$0xff] %v1607
    // Predicated region
    $region50: #{tpu_custom_call.1} parent=1 // pred_check
      _
    $region51: #{tpu_custom_call.1} parent=1 // pred_check_branch
      %1613 = sbr.rel (0) target = $region53
    $region52: #{tpu_custom_call.1} parent=1 // pred_region
      %s1615 = ssub.s32 256, 256
      %1616 = vsyncadd [#allocation4], %s1615
      %s1617 = sshll.u32 [#allocation8], 4
      %s1618 = int_to_ptr.vmem [resolvable:$true] %s1617
      %1623 = dma.vmem_to_hbm [thread:$0]  %s1618, 256, %s9, [#allocation4], 128, 128, 8
    $region53: #{tpu_custom_call.1} parent=1 // pred_fallthru
      _
    // Predicated region
    $region54: #{tpu_custom_call.1} parent=1 // pred_check
      _
    $region55: #{tpu_custom_call.1} parent=1 // pred_check_branch
      %1625 = sbr.rel (0) target = $region57
    $region56: #{tpu_custom_call.1} parent=1 // pred_region
      %1626 = dma.done [#allocation4], 256
    $region57: #{tpu_custom_call.1} parent=1 // pred_fallthru
      _
    %1627 = vsyncpa [#allocation3], 1
    %1628 = vsyncpa [#allocation6], 1
    %1629 = vsyncpa [#allocation4], 1

</llo_original>
